<compile_context>
chip_gen: v6e
topology: v6e:2x2x1
jax: 0.10.0
libtpu: 0.0.40
codegen_flags: <defaults>
</compile_context>

<pallas_src>
import functools

import jax
import jax.numpy as jnp
import numpy as np
from jax.experimental import pallas as pl
from jax.experimental.pallas import tpu as pltpu


def _cdiv(a, b):
    return -(-a // b)


# ----------------------------------------------------------------------------
# Pallas kernel
# ----------------------------------------------------------------------------
def _interp_scatter_kernel(zt_ref, out_ref, *, ny, nx):
    """One grid step: scatter the bilinear-gradient corner weights of one
    point tile into a per-(corner, pixel) accumulator.

    zt_ref : (2, pt)  f32  row 0 = y coord, row 1 = x coord (normalized)
    out_ref: (8, hw)  f32  rows (2c, 2c+1) = [c0, c1] weights destined for
                           corner c in {(y,x), (y+1,x), (y,x+1), (y+1,x+1)},
                           binned by the *base* pixel index flat = y*nx + x.
    """
    pt = zt_ref.shape[1]
    hw = ny * nx

    @pl.when(pl.program_id(1) == 0)
    def _():
        out_ref[...] = jnp.zeros_like(out_ref)

    zt = zt_ref[...]                                        # (2, pt)
    x0y = zt[0:1, :] * jnp.float32(ny - 1)                  # (1, pt)
    x0x = zt[1:2, :] * jnp.float32(nx - 1)                  # (1, pt)

    # out-of-range mask (same condition as the torch code); padded points are
    # deliberately out of range so they land here and contribute nothing.
    locs = jnp.logical_or(
        jnp.logical_or(x0y < 0.0, x0y > jnp.float32(ny - 1)),
        jnp.logical_or(x0x < 0.0, x0x > jnp.float32(nx - 1)),
    )                                                       # (1, pt) bool
    x0y = jnp.where(locs, 0.0, x0y)
    x0x = jnp.where(locs, 0.0, x0x)

    yg = jnp.floor(x0y)
    xg = jnp.floor(x0x)
    dx = xg - x0x                                           # in (-1, 0]
    dy = yg - x0y
    flat = (yg * jnp.float32(nx) + xg).astype(jnp.int32)    # (1, pt)

    valid = jnp.where(locs, 0.0, 1.0)
    # Mask corners that would fall outside the image when xg == nx-1 or
    # yg == ny-1 (exact-boundary coords).  This also guarantees the +1 / +nx /
    # +nx+1 flattened shifts applied in the wrapper never wrap.
    iy = jnp.where(yg < jnp.float32(ny - 1), 1.0, 0.0)
    ix = jnp.where(xg < jnp.float32(nx - 1), 1.0, 0.0)
    vy = valid * iy
    vx = valid * ix
    vxy = valid * ix * iy

    one = jnp.float32(1.0)
    # Bilinear-gradient corner weights (c0 = d*dx + a1, c1 = d*dy + a3):
    ws = [(-dx - one) * valid, (-dy - one) * valid,         # corner (y  , x  )
          (dx + one) * vy,      dy * vy,                    # corner (y+1, x  )
          dx * vx,              (dy + one) * vx,            # corner (y  , x+1)
          -dx * vxy,            -dy * vxy]                  # corner (y+1, x+1)

    row = jax.lax.broadcasted_iota(jnp.int32, (8, pt), 0)
    w = jnp.zeros((8, pt), jnp.float32)
    for r, wr in enumerate(ws):
        w = jnp.where(row == r, wr, w)                      # (8, pt) f32

    # hi/lo bf16 split of the weights: two bf16 matmuls sharing one bf16
    # one-hot give ~f32 accuracy with bf16 operand traffic.
    w_hi = w.astype(jnp.bfloat16)
    w_lo = (w - w_hi.astype(jnp.float32)).astype(jnp.bfloat16)

    # Single bf16 one-hot per tile (only one compare/materialization now, so
    # the iota-rematerialization concern from the review is moot).
    hrow = jax.lax.broadcasted_iota(jnp.int32, (hw, pt), 0)  # (hw, pt)
    onehot = jnp.where(hrow == flat, 1.0, 0.0).astype(jnp.bfloat16)

    nt = (((1,), (1,)), ((), ()))                            # contract point dim (A @ B^T)
    out_ref[...] += jax.lax.dot_general(
        w_hi, onehot, nt, preferred_element_type=jnp.float32)
    out_ref[...] += jax.lax.dot_general(
        w_lo, onehot, nt, preferred_element_type=jnp.float32)


# ----------------------------------------------------------------------------
# Wrapper
# ----------------------------------------------------------------------------
@functools.partial(jax.jit, static_argnames=("pt_tile", "num_splits"))
def fastbatch_interp_grad(img, z, *, pt_tile=None, num_splits=None):
    """Equivalent of FastbatchcolorimageInterpNet(img).forward(z) for the
    default grad_required=True path.

    img: (b, nc, ny, nx) float32
    z:   (num_pts, 2)    float32 normalized coords (col 0 -> y, col 1 -> x)
    returns (b, 2) float32
    """
    b, nc, ny, nx = img.shape
    hw = ny * nx
    num_pts = z.shape[0]

    if pt_tile is None:
        # Deep-K tiles for the MXU, capped so the bf16 one-hot (hw x pt) stays
        # small; collapse to a single step when the point count is small.
        cap = max(128, min(512, ((2 << 20) // (hw * 2)) // 128 * 128))
        pt_tile = min(cap, max(128, _cdiv(num_pts, 128) * 128))
    total_tiles = _cdiv(num_pts, pt_tile)
    if num_splits is None:
        # Leading "parallel" axis so v7x's second TensorCore gets half the
        # point tiles (its own accumulator slab); harmless on v5e/v6e.
        num_splits = 2 if total_tiles >= 2 else 1
    tiles_per_split = _cdiv(total_tiles, num_splits)
    p_pad = num_splits * tiles_per_split * pt_tile

    zt = jnp.transpose(z).astype(jnp.float32)                # (2, num_pts)
    if p_pad != num_pts:
        # padded coords are out of range -> masked by `locs` inside the kernel
        zt = jnp.pad(zt, ((0, 0), (0, p_pad - num_pts)), constant_values=-1.0)

    kernel = functools.partial(_interp_scatter_kernel, ny=ny, nx=nx)

    # TODO(synk): for very large images (hw >> 16K, e.g. 224x224 on v7x's
    # 64 MiB VMEM) an additional hw-blocked grid axis would be needed; the
    # CIFAR-scale images this module targets fit comfortably.
    macc = pl.pallas_call(
        kernel,
        out_shape=jax.ShapeDtypeStruct((num_splits * 8, hw), jnp.float32),
        grid=(num_splits, tiles_per_split),
        in_specs=[
            pl.BlockSpec((2, pt_tile),
                         lambda c, s: (0, c * tiles_per_split + s)),
        ],
        out_specs=pl.BlockSpec((8, hw), lambda c, s: (c, 0)),
        compiler_params=pltpu.CompilerParams(
            dimension_semantics=("parallel", "arbitrary"),
            vmem_limit_bytes=32 * 1024 * 1024,
        ),
    )(zt)

    macc8 = macc.reshape(num_splits, 8, hw).sum(axis=0)      # (8, hw)

    def shift(a, k):
        # non-circular shift toward higher flattened pixel indices
        return jnp.pad(a, ((0, 0), (k, 0)))[:, :hw]

    # Apply the per-corner pixel offsets once (tiny shift-adds, done in XLA).
    m = (macc8[0:2]
         + shift(macc8[2:4], nx)
         + shift(macc8[4:6], 1)
         + shift(macc8[6:8], nx + 1))                        # (2, hw)

    # Final contraction with the channel-summed image (torch.sum over dim 1
    # folded in) — a small GEMV kept out of the kernel per the review.
    imgsum = img.astype(jnp.float32).sum(axis=1).reshape(b, hw)   # (b, hw)
    return jnp.einsum("bh,jh->bj", imgsum, m)                # (b, 2)


# ----------------------------------------------------------------------------
# Pure-JAX reference (mirrors the torch code) for the correctness check.
# ----------------------------------------------------------------------------
def _reference(img, z):
    b, nc, ny, nx = img.shape
    x0y = z[:, 0] * (ny - 1)
    x0x = z[:, 1] * (nx - 1)
    locs = (x0y < 0) | (x0y > ny - 1) | (x0x < 0) | (x0x > nx - 1)
    x0y = jnp.where(locs, 0.0, x0y)
    x0x = jnp.where(locs, 0.0, x0x)
    yg = jnp.floor(x0y).astype(jnp.int32)
    xg = jnp.floor(x0x).astype(jnp.int32)
    g00 = img[:, :, yg, xg]
    g10 = img[:, :, yg + 1, xg]
    g01 = img[:, :, yg, xg + 1]
    g11 = img[:, :, yg + 1, xg + 1]
    a1 = g10 - g00
    a2 = g11 - g01
    a3 = g01 - g00
    d = a1 - a2
    c0 = d * (xg.astype(jnp.float32) - x0x) + a1
    c1 = d * (yg.astype(jnp.float32) - x0y) + a3
    c0 = jnp.where(locs, 0.0, c0)
    c1 = jnp.where(locs, 0.0, c1)
    grad = jnp.stack([c0, c1], axis=2)                       # (b, nc, 2, P)
    return jnp.sum(grad, axis=(1, 3))


# TODO(synk): the grad_required=False branch (bilinear interpolation values of
# shape (b, nc, num_pts)) is not implemented; only the default grad path is.

if __name__ == "__main__":
    B, NC, NY, NX = 2, 3, 32, 32        # CIFAR-like batched color image

    key = jax.random.PRNGKey(0)
    k_img, k_z1, k_z2 = jax.random.split(key, 3)

    # deterministic "module parameter": the batched color image
    img = jax.random.normal(k_img, (B, NC, NY, NX), dtype=jnp.float32)

    # Test 1: small point count -> single-tile, single-step path.
    z1 = jax.random.uniform(k_z1, (200, 2), dtype=jnp.float32,
                            minval=-0.05, maxval=1.04)
    out1 = jax.block_until_ready(fastbatch_interp_grad(img, z1))
    ref1 = _reference(img, z1)
    np.testing.assert_allclose(np.asarray(out1), np.asarray(ref1),
                               rtol=1e-3, atol=5e-3)

    # Test 2: larger point count -> multi-tile reduction + parallel split path.
    z2 = jax.random.uniform(k_z2, (1900, 2), dtype=jnp.float32,
                            minval=-0.05, maxval=1.04)
    out2 = jax.block_until_ready(fastbatch_interp_grad(img, z2))
    ref2 = _reference(img, z2)
    np.testing.assert_allclose(np.asarray(out2), np.asarray(ref2),
                               rtol=1e-3, atol=5e-3)

    print("KERNEL_OK")
</pallas_src>

<mosaic_0001>
module attributes {stable_mosaic.version = 11 : i64} {
  func.func @_interp_scatter_kernel(%arg0: i32, %arg1: i32, %arg2: memref<2x256xf32, #tpu.memory_space<vmem>>, %arg3: memref<8x1024xf32, #tpu.memory_space<vmem>>) attributes {dimension_semantics = [#tpu.dimension_semantics<parallel>, #tpu.dimension_semantics<arbitrary>], iteration_bounds = array<i64: 1, 1>, scalar_prefetch = 0 : i64, scratch_operands = 0 : i64, tpu.core_type = #tpu.core_type<tc>, window_params = [{transform_indices = @transform_0, window_bounds = array<i64: 2, 256>}, {transform_indices = @transform_1, window_bounds = array<i64: 8, 1024>}]} {
    %c0_i32 = arith.constant 0 : i32
    %0 = arith.cmpi eq, %arg1, %c0_i32 : i32
    %1 = arith.extui %0 : i1 to i32
    %c0_i32_0 = arith.constant 0 : i32
    %2 = arith.cmpi ne, %1, %c0_i32_0 : i32
    scf.if %2 {
      %cst_40 = arith.constant 0.000000e+00 : f32
      %135 = vector.broadcast %cst_40 : f32 to vector<8x1024xf32>
      %c0_41 = arith.constant 0 : index
      %c0_42 = arith.constant 0 : index
      %136 = vector.load %arg3[%c0_41, %c0_42] : memref<8x1024xf32, #tpu.memory_space<vmem>>, vector<8x1024xf32>
      tpu.vector_store %arg3[%c0_41, %c0_42], %135 {strides = array<i32>} : memref<8x1024xf32, #tpu.memory_space<vmem>>, vector<8x1024xf32>,
    } else {
    }
    %c0 = arith.constant 0 : index
    %c0_1 = arith.constant 0 : index
    %3 = vector.load %arg2[%c0, %c0_1] : memref<2x256xf32, #tpu.memory_space<vmem>>, vector<2x256xf32>
    %4 = vector.extract_strided_slice %3 {offsets = [0, 0], sizes = [1, 256], strides = [1, 1]} : vector<2x256xf32> to vector<1x256xf32>
    %cst = arith.constant 3.100000e+01 : f32
    %5 = vector.broadcast %cst : f32 to vector<1x256xf32>
    %6 = arith.mulf %4, %5 : vector<1x256xf32>
    %7 = vector.extract_strided_slice %3 {offsets = [1, 0], sizes = [1, 256], strides = [1, 1]} : vector<2x256xf32> to vector<1x256xf32>
    %cst_2 = arith.constant 3.100000e+01 : f32
    %8 = vector.broadcast %cst_2 : f32 to vector<1x256xf32>
    %9 = arith.mulf %7, %8 : vector<1x256xf32>
    %cst_3 = arith.constant 0.000000e+00 : f32
    %10 = vector.broadcast %cst_3 : f32 to vector<1x256xf32>
    %11 = arith.cmpf olt, %6, %10 : vector<1x256xf32>
    %cst_4 = arith.constant 3.100000e+01 : f32
    %12 = vector.broadcast %cst_4 : f32 to vector<1x256xf32>
    %13 = arith.cmpf ogt, %6, %12 : vector<1x256xf32>
    %14 = arith.ori %11, %13 : vector<1x256xi1>
    %cst_5 = arith.constant 0.000000e+00 : f32
    %15 = vector.broadcast %cst_5 : f32 to vector<1x256xf32>
    %16 = arith.cmpf olt, %9, %15 : vector<1x256xf32>
    %cst_6 = arith.constant 3.100000e+01 : f32
    %17 = vector.broadcast %cst_6 : f32 to vector<1x256xf32>
    %18 = arith.cmpf ogt, %9, %17 : vector<1x256xf32>
    %19 = arith.ori %16, %18 : vector<1x256xi1>
    %20 = arith.ori %14, %19 : vector<1x256xi1>
    %cst_7 = arith.constant 0.000000e+00 : f32
    %21 = vector.broadcast %cst_7 : f32 to vector<1x256xf32>
    %22 = arith.select %20, %21, %6 : vector<1x256xi1>, vector<1x256xf32>
    %cst_8 = arith.constant 0.000000e+00 : f32
    %23 = vector.broadcast %cst_8 : f32 to vector<1x256xf32>
    %24 = arith.select %20, %23, %9 : vector<1x256xi1>, vector<1x256xf32>
    %25 = math.floor %22 : vector<1x256xf32>
    %26 = math.floor %24 : vector<1x256xf32>
    %27 = arith.subf %26, %24 : vector<1x256xf32>
    %28 = arith.subf %25, %22 : vector<1x256xf32>
    %cst_9 = arith.constant 3.200000e+01 : f32
    %29 = vector.broadcast %cst_9 : f32 to vector<1x256xf32>
    %30 = arith.mulf %25, %29 : vector<1x256xf32>
    %31 = arith.addf %30, %26 : vector<1x256xf32>
    %32 = arith.fptosi %31 : vector<1x256xf32> to vector<1x256xi32>
    %cst_10 = arith.constant 0.000000e+00 : f32
    %cst_11 = arith.constant 1.000000e+00 : f32
    %33 = vector.broadcast %cst_10 : f32 to vector<1x256xf32>
    %34 = vector.broadcast %cst_11 : f32 to vector<1x256xf32>
    %35 = arith.select %20, %33, %34 : vector<1x256xi1>, vector<1x256xf32>
    %cst_12 = arith.constant 3.100000e+01 : f32
    %36 = vector.broadcast %cst_12 : f32 to vector<1x256xf32>
    %37 = arith.cmpf olt, %25, %36 : vector<1x256xf32>
    %cst_13 = arith.constant 1.000000e+00 : f32
    %cst_14 = arith.constant 0.000000e+00 : f32
    %38 = vector.broadcast %cst_13 : f32 to vector<1x256xf32>
    %39 = vector.broadcast %cst_14 : f32 to vector<1x256xf32>
    %40 = arith.select %37, %38, %39 : vector<1x256xi1>, vector<1x256xf32>
    %cst_15 = arith.constant 3.100000e+01 : f32
    %41 = vector.broadcast %cst_15 : f32 to vector<1x256xf32>
    %42 = arith.cmpf olt, %26, %41 : vector<1x256xf32>
    %cst_16 = arith.constant 1.000000e+00 : f32
    %cst_17 = arith.constant 0.000000e+00 : f32
    %43 = vector.broadcast %cst_16 : f32 to vector<1x256xf32>
    %44 = vector.broadcast %cst_17 : f32 to vector<1x256xf32>
    %45 = arith.select %42, %43, %44 : vector<1x256xi1>, vector<1x256xf32>
    %46 = arith.mulf %35, %40 : vector<1x256xf32>
    %47 = arith.mulf %35, %45 : vector<1x256xf32>
    %48 = arith.mulf %35, %45 : vector<1x256xf32>
    %49 = arith.mulf %48, %40 : vector<1x256xf32>
    %cst_18 = arith.constant 0.000000e+00 : f32
    %50 = vector.broadcast %cst_18 : f32 to vector<1x256xf32>
    %51 = arith.subf %50, %27 : vector<1x256xf32>
    %cst_19 = arith.constant 1.000000e+00 : f32
    %52 = vector.broadcast %cst_19 : f32 to vector<1x256xf32>
    %53 = arith.subf %51, %52 : vector<1x256xf32>
    %54 = arith.mulf %53, %35 : vector<1x256xf32>
    %cst_20 = arith.constant 0.000000e+00 : f32
    %55 = vector.broadcast %cst_20 : f32 to vector<1x256xf32>
    %56 = arith.subf %55, %28 : vector<1x256xf32>
    %cst_21 = arith.constant 1.000000e+00 : f32
    %57 = vector.broadcast %cst_21 : f32 to vector<1x256xf32>
    %58 = arith.subf %56, %57 : vector<1x256xf32>
    %59 = arith.mulf %58, %35 : vector<1x256xf32>
    %cst_22 = arith.constant 1.000000e+00 : f32
    %60 = vector.broadcast %cst_22 : f32 to vector<1x256xf32>
    %61 = arith.addf %27, %60 : vector<1x256xf32>
    %62 = arith.mulf %61, %46 : vector<1x256xf32>
    %63 = arith.mulf %28, %46 : vector<1x256xf32>
    %64 = arith.mulf %27, %47 : vector<1x256xf32>
    %cst_23 = arith.constant 1.000000e+00 : f32
    %65 = vector.broadcast %cst_23 : f32 to vector<1x256xf32>
    %66 = arith.addf %28, %65 : vector<1x256xf32>
    %67 = arith.mulf %66, %47 : vector<1x256xf32>
    %cst_24 = arith.constant 0.000000e+00 : f32
    %68 = vector.broadcast %cst_24 : f32 to vector<1x256xf32>
    %69 = arith.subf %68, %27 : vector<1x256xf32>
    %70 = arith.mulf %69, %49 : vector<1x256xf32>
    %cst_25 = arith.constant 0.000000e+00 : f32
    %71 = vector.broadcast %cst_25 : f32 to vector<1x256xf32>
    %72 = arith.subf %71, %28 : vector<1x256xf32>
    %73 = arith.mulf %72, %49 : vector<1x256xf32>
    %74 = tpu.iota {dimensions = array<i32: 0>} : vector<8x256xi32>
    %cst_26 = arith.constant 0.000000e+00 : f32
    %75 = vector.broadcast %cst_26 : f32 to vector<8x256xf32>
    %c0_i32_27 = arith.constant 0 : i32
    %76 = vector.broadcast %c0_i32_27 : i32 to vector<8x256xi32>
    %77 = arith.cmpi eq, %74, %76 : vector<8x256xi32>
    %78 = vector.shape_cast %54 : vector<1x256xf32> to vector<1x256xf32>
    %79 = vector.broadcast %78 : vector<1x256xf32> to vector<8x256xf32>
    %80 = arith.select %77, %79, %75 : vector<8x256xi1>, vector<8x256xf32>
    %c1_i32 = arith.constant 1 : i32
    %81 = vector.broadcast %c1_i32 : i32 to vector<8x256xi32>
    %82 = arith.cmpi eq, %74, %81 : vector<8x256xi32>
    %83 = vector.shape_cast %59 : vector<1x256xf32> to vector<1x256xf32>
    %84 = vector.broadcast %83 : vector<1x256xf32> to vector<8x256xf32>
    %85 = arith.select %82, %84, %80 : vector<8x256xi1>, vector<8x256xf32>
    %c2_i32 = arith.constant 2 : i32
    %86 = vector.broadcast %c2_i32 : i32 to vector<8x256xi32>
    %87 = arith.cmpi eq, %74, %86 : vector<8x256xi32>
    %88 = vector.shape_cast %62 : vector<1x256xf32> to vector<1x256xf32>
    %89 = vector.broadcast %88 : vector<1x256xf32> to vector<8x256xf32>
    %90 = arith.select %87, %89, %85 : vector<8x256xi1>, vector<8x256xf32>
    %c3_i32 = arith.constant 3 : i32
    %91 = vector.broadcast %c3_i32 : i32 to vector<8x256xi32>
    %92 = arith.cmpi eq, %74, %91 : vector<8x256xi32>
    %93 = vector.shape_cast %63 : vector<1x256xf32> to vector<1x256xf32>
    %94 = vector.broadcast %93 : vector<1x256xf32> to vector<8x256xf32>
    %95 = arith.select %92, %94, %90 : vector<8x256xi1>, vector<8x256xf32>
    %c4_i32 = arith.constant 4 : i32
    %96 = vector.broadcast %c4_i32 : i32 to vector<8x256xi32>
    %97 = arith.cmpi eq, %74, %96 : vector<8x256xi32>
    %98 = vector.shape_cast %64 : vector<1x256xf32> to vector<1x256xf32>
    %99 = vector.broadcast %98 : vector<1x256xf32> to vector<8x256xf32>
    %100 = arith.select %97, %99, %95 : vector<8x256xi1>, vector<8x256xf32>
    %c5_i32 = arith.constant 5 : i32
    %101 = vector.broadcast %c5_i32 : i32 to vector<8x256xi32>
    %102 = arith.cmpi eq, %74, %101 : vector<8x256xi32>
    %103 = vector.shape_cast %67 : vector<1x256xf32> to vector<1x256xf32>
    %104 = vector.broadcast %103 : vector<1x256xf32> to vector<8x256xf32>
    %105 = arith.select %102, %104, %100 : vector<8x256xi1>, vector<8x256xf32>
    %c6_i32 = arith.constant 6 : i32
    %106 = vector.broadcast %c6_i32 : i32 to vector<8x256xi32>
    %107 = arith.cmpi eq, %74, %106 : vector<8x256xi32>
    %108 = vector.shape_cast %70 : vector<1x256xf32> to vector<1x256xf32>
    %109 = vector.broadcast %108 : vector<1x256xf32> to vector<8x256xf32>
    %110 = arith.select %107, %109, %105 : vector<8x256xi1>, vector<8x256xf32>
    %c7_i32 = arith.constant 7 : i32
    %111 = vector.broadcast %c7_i32 : i32 to vector<8x256xi32>
    %112 = arith.cmpi eq, %74, %111 : vector<8x256xi32>
    %113 = vector.shape_cast %73 : vector<1x256xf32> to vector<1x256xf32>
    %114 = vector.broadcast %113 : vector<1x256xf32> to vector<8x256xf32>
    %115 = arith.select %112, %114, %110 : vector<8x256xi1>, vector<8x256xf32>
    %116 = arith.truncf %115 : vector<8x256xf32> to vector<8x256xbf16>
    %117 = arith.extf %116 : vector<8x256xbf16> to vector<8x256xf32>
    %118 = arith.subf %115, %117 : vector<8x256xf32>
    %119 = arith.truncf %118 : vector<8x256xf32> to vector<8x256xbf16>
    %120 = tpu.iota {dimensions = array<i32: 0>} : vector<1024x256xi32>
    %121 = vector.broadcast %32 : vector<1x256xi32> to vector<1024x256xi32>
    %122 = arith.cmpi eq, %120, %121 : vector<1024x256xi32>
    %cst_28 = arith.constant 1.000000e+00 : f32
    %cst_29 = arith.constant 0.000000e+00 : f32
    %123 = vector.broadcast %cst_28 : f32 to vector<1024x256xf32>
    %124 = vector.broadcast %cst_29 : f32 to vector<1024x256xf32>
    %125 = arith.select %122, %123, %124 : vector<1024x256xi1>, vector<1024x256xf32>
    %126 = arith.truncf %125 : vector<1024x256xf32> to vector<1024x256xbf16>
    %c0_30 = arith.constant 0 : index
    %c0_31 = arith.constant 0 : index
    %127 = vector.load %arg3[%c0_30, %c0_31] : memref<8x1024xf32, #tpu.memory_space<vmem>>, vector<8x1024xf32>
    %cst_32 = arith.constant dense<0.000000e+00> : vector<8x1024xf32>
    %128 = tpu.matmul %116, %126, %cst_32 {dimension_numbers = #tpu.dot_dimension_numbers<[1], [1], [0], [0], [0, 0, 1, 0], [], []>} : vector<8x256xbf16>, vector<1024x256xbf16>, vector<8x1024xf32> -> vector<8x1024xf32>
    %129 = arith.addf %127, %128 : vector<8x1024xf32>
    %c0_33 = arith.constant 0 : index
    %c0_34 = arith.constant 0 : index
    %130 = vector.load %arg3[%c0_33, %c0_34] : memref<8x1024xf32, #tpu.memory_space<vmem>>, vector<8x1024xf32>
    tpu.vector_store %arg3[%c0_33, %c0_34], %129 {strides = array<i32>} : memref<8x1024xf32, #tpu.memory_space<vmem>>, vector<8x1024xf32>,
    %c0_35 = arith.constant 0 : index
    %c0_36 = arith.constant 0 : index
    %131 = vector.load %arg3[%c0_35, %c0_36] : memref<8x1024xf32, #tpu.memory_space<vmem>>, vector<8x1024xf32>
    %cst_37 = arith.constant dense<0.000000e+00> : vector<8x1024xf32>
    %132 = tpu.matmul %119, %126, %cst_37 {dimension_numbers = #tpu.dot_dimension_numbers<[1], [1], [0], [0], [0, 0, 1, 0], [], []>} : vector<8x256xbf16>, vector<1024x256xbf16>, vector<8x1024xf32> -> vector<8x1024xf32>
    %133 = arith.addf %131, %132 : vector<8x1024xf32>
    %c0_38 = arith.constant 0 : index
    %c0_39 = arith.constant 0 : index
    %134 = vector.load %arg3[%c0_38, %c0_39] : memref<8x1024xf32, #tpu.memory_space<vmem>>, vector<8x1024xf32>
    tpu.vector_store %arg3[%c0_38, %c0_39], %133 {strides = array<i32>} : memref<8x1024xf32, #tpu.memory_space<vmem>>, vector<8x1024xf32>,
    return
  }
  func.func @transform_0(%arg0: i32, %arg1: i32) -> (i32, i32) {
    %c1_i32 = arith.constant 1 : i32
    %0 = arith.muli %arg0, %c1_i32 : i32
    %1 = arith.addi %0, %arg1 : i32
    %c0_i32 = arith.constant 0 : i32
    %c0_i32_0 = arith.constant 0 : i32
    return %c0_i32, %1 : i32, i32
  }
  func.func @transform_1(%arg0: i32, %arg1: i32) -> (i32, i32) {
    %c0_i32 = arith.constant 0 : i32
    %c0_i32_0 = arith.constant 0 : i32
    return %arg0, %c0_i32 : i32, i32
  }
}

</mosaic_0001>

<llo_original>
// kernel: fastbatch_interp_grad.1
$region0: #{fastbatch_interp_grad.1}
  #allocation0 [shape = 'u32[]', space=smem, size = 0x4, offset = 0x4, fixed_abs, tag = 'smem constant byte address 0x4 - core index']
  #allocation1 [shape = 'u32[144,128]{1,0:T(1,128)}', space=vmem, size = 0x12000, scoped, tag = 'internal scratch']
  %s0 = inlined_call_operand.vmem [shape: f32[2,256], index: 0, kind: input, shape index: {}]
  %s1 = inlined_call_operand.vmem [shape: f32[8,1024], index: 1, kind: output, shape index: {}]
  %s2 = sld [smem:[#allocation0]]
  $region18: #{fastbatch_interp_grad.1} parent=0
    _
  %s4 = ssub.s32 1, %s2
  %s5 = scalar_select 0, %s4, %s2
  // Predicated region
  $region2: #{fastbatch_interp_grad.1} parent=0 // pred_check
    _
  $region3: #{fastbatch_interp_grad.1} parent=0 // pred_check_branch
    %7 = sbr.rel (0) target = $region5
  $region4: #{fastbatch_interp_grad.1} parent=0 // pred_region
    %s8 = sadd.s32 0, 0
    %s9 = smul.u32 2, %s8
    %p10 = scmp.lt.s32.totalorder %s9, 1
    %s11 = scalar_select %p10, %s9, 1
    %s12 = smul.addr %s11, 2
    %s13 = scalar_lea.vmem %s0, %s12
    %s14 = sadd.s32 0, 0
    %s15 = smul.u32 2, %s14
  $region5: #{fastbatch_interp_grad.1} parent=0 // pred_fallthru
    _
  %s16 = sadd.s32 0, 0
  %s17 = smul.u32 2, %s16
  %p18 = scmp.lt.s32.totalorder %s17, 1
  %s19 = scalar_select %p18, %s17, 1
  %s20 = smul.addr %s19, 2
  %s21 = scalar_lea.vmem %s0, %s20
  %s22 = sadd.s32 0, 0
  %s23 = smul.u32 2, %s22
  %p24 = scmp.lt.s32.totalorder %s23, 1
  %s25 = scalar_select %p24, %s23, 1
  %s26 = smul.addr %s25, 2
  %s27 = scalar_lea.vmem %s0, %s26
  %s28 = sadd.s32 0, 0
  %s29 = smul.u32 2, %s28
  %p30 = scmp.eq.s32.totalorder 0, 0
  // Predicated region
  $region6: #{fastbatch_interp_grad.1} parent=0 // pred_check
    %p31 = pneg %p30
  $region7: #{fastbatch_interp_grad.1} parent=0 // pred_check_branch
    %33 = sbr.rel (%p31) target = $region9
  $region8: #{fastbatch_interp_grad.1} parent=0 // pred_region
    %34 = vst [vmem:[%s1] sm:$0xff] 0.0
    %35 = vst [vmem:[%s1 + $0x8] sm:$0xff] 0.0
    %36 = vst [vmem:[%s1 + $0x10] sm:$0xff] 0.0
    %37 = vst [vmem:[%s1 + $0x18] sm:$0xff] 0.0
    %38 = vst [vmem:[%s1 + $0x20] sm:$0xff] 0.0
    %39 = vst [vmem:[%s1 + $0x28] sm:$0xff] 0.0
    %40 = vst [vmem:[%s1 + $0x30] sm:$0xff] 0.0
    %41 = vst [vmem:[%s1 + $0x38] sm:$0xff] 0.0
  $region9: #{fastbatch_interp_grad.1} parent=0 // pred_fallthru
    _
  %v42 = vld [vmem:[%s27] sm:$0xf]
  %v43 = vmul.f32 %v42, 31.0
  %vm44 = vcmp.lt.f32.partialorder %v43, 0.0
  %vm45 = vcmp.gt.f32.partialorder %v43, 31.0
  %vm46 = vmor %vm44, %vm45
  %v47 = vsel %vm46, 1, 0
  %v48 = vrot.slane %v47, 7
  %v49 = vrot.slane %v48, 2
  %vm50 = vcmp.ne.s32.totalorder %v49, 0
  %vm51 = vmor %vm46, %vm50
  %v52 = vsel %vm51, 0.0, %v43
  %v54 = vrot.slane %v43, 7
  %v55 = vrot.slane %v54, 2
  %v57 = vsel %vm51, 0.0, %v55
  %v58 = vfloor.f32 %v52
  %v59 = vfloor.f32 %v57
  %v60 = vsub.f32 %v59, %v57
  %v61 = vsub.f32 %v58, %v52
  %v62 = vmul.f32 %v58, 32.0
  %v63 = vadd.f32 %v62, %v59
  %v64 = vcvt.f32.s32.to.zero.pseudo %v63
  %v65 = vsel %vm51, 0.0, 1.0
  %vm66 = vcmp.lt.f32.partialorder %v58, 31.0
  %v67 = vsel %vm66, 1.0, 0.0
  %vm68 = vcmp.lt.f32.partialorder %v59, 31.0
  %v69 = vsel %vm68, 1.0, 0.0
  %v70 = vmul.f32 %v65, %v67
  %v71 = vmul.f32 %v65, %v69
  %v72 = vmul.f32 %v71, %v67
  %v73 = vsub.f32 0.0, %v60
  %v74 = vsub.f32 %v73, 1.0
  %v75 = vmul.f32 %v74, %v65
  %v76 = vsub.f32 0.0, %v61
  %v77 = vsub.f32 %v76, 1.0
  %v78 = vmul.f32 %v77, %v65
  %v79 = vadd.f32 %v60, 1.0
  %v80 = vmul.f32 %v79, %v70
  %v81 = vmul.f32 %v61, %v70
  %v82 = vmul.f32 %v60, %v71
  %v83 = vadd.f32 %v61, 1.0
  %v84 = vmul.f32 %v83, %v71
  %v85 = vmul.f32 %v73, %v72
  %v86 = vmul.f32 %v76, %v72
  %v87 = vlaneseq
  %v88 = vshrl.u32 %v87, 7
  %vm89 = vcmp.eq.s32.totalorder %v88, 0
  %v91 = vlaneseq
  %v92 = vshrl.u32 %v91, 7
  %v93 = vsub.s32 0, %v92
  %v94 = vrot.slane %v75, %v93
  %v95 = vlaneseq
  %v96 = vshrl.u32 %v95, 7
  %v97 = vsub.s32 2, %v96
  %v98 = vrot.slane %v75, %v97
  %v101 = vlaneseq
  %v102 = vshrl.u32 %v101, 7
  %v103 = vsub.s32 0, %v102
  %v104 = vrot.slane %v94, %v103
  %v105 = vlaneseq
  %v106 = vshrl.u32 %v105, 7
  %v107 = vsub.s32 0, %v106
  %v108 = vrot.slane %v98, %v107
  %v109 = vsel %vm89, %v104, 0.0
  %v110 = vsel %vm89, %v108, 0.0
  %vm111 = vcmp.eq.s32.totalorder %v88, 1
  %v113 = vlaneseq
  %v114 = vshrl.u32 %v113, 7
  %v115 = vsub.s32 0, %v114
  %v116 = vrot.slane %v78, %v115
  %v117 = vlaneseq
  %v118 = vshrl.u32 %v117, 7
  %v119 = vsub.s32 2, %v118
  %v120 = vrot.slane %v78, %v119
  %v123 = vlaneseq
  %v124 = vshrl.u32 %v123, 7
  %v125 = vsub.s32 0, %v124
  %v126 = vrot.slane %v116, %v125
  %v127 = vlaneseq
  %v128 = vshrl.u32 %v127, 7
  %v129 = vsub.s32 0, %v128
  %v130 = vrot.slane %v120, %v129
  %v131 = vsel %vm111, %v126, %v109
  %v132 = vsel %vm111, %v130, %v110
  %vm133 = vcmp.eq.s32.totalorder %v88, 2
  %v135 = vlaneseq
  %v136 = vshrl.u32 %v135, 7
  %v137 = vsub.s32 0, %v136
  %v138 = vrot.slane %v80, %v137
  %v139 = vlaneseq
  %v140 = vshrl.u32 %v139, 7
  %v141 = vsub.s32 2, %v140
  %v142 = vrot.slane %v80, %v141
  %v145 = vlaneseq
  %v146 = vshrl.u32 %v145, 7
  %v147 = vsub.s32 0, %v146
  %v148 = vrot.slane %v138, %v147
  %v149 = vlaneseq
  %v150 = vshrl.u32 %v149, 7
  %v151 = vsub.s32 0, %v150
  %v152 = vrot.slane %v142, %v151
  %v153 = vsel %vm133, %v148, %v131
  %v154 = vsel %vm133, %v152, %v132
  %vm155 = vcmp.eq.s32.totalorder %v88, 3
  %v157 = vlaneseq
  %v158 = vshrl.u32 %v157, 7
  %v159 = vsub.s32 0, %v158
  %v160 = vrot.slane %v81, %v159
  %v161 = vlaneseq
  %v162 = vshrl.u32 %v161, 7
  %v163 = vsub.s32 2, %v162
  %v164 = vrot.slane %v81, %v163
  %v167 = vlaneseq
  %v168 = vshrl.u32 %v167, 7
  %v169 = vsub.s32 0, %v168
  %v170 = vrot.slane %v160, %v169
  %v171 = vlaneseq
  %v172 = vshrl.u32 %v171, 7
  %v173 = vsub.s32 0, %v172
  %v174 = vrot.slane %v164, %v173
  %v175 = vsel %vm155, %v170, %v153
  %v176 = vsel %vm155, %v174, %v154
  %vm177 = vcmp.eq.s32.totalorder %v88, 4
  %v179 = vlaneseq
  %v180 = vshrl.u32 %v179, 7
  %v181 = vsub.s32 0, %v180
  %v182 = vrot.slane %v82, %v181
  %v183 = vlaneseq
  %v184 = vshrl.u32 %v183, 7
  %v185 = vsub.s32 2, %v184
  %v186 = vrot.slane %v82, %v185
  %v189 = vlaneseq
  %v190 = vshrl.u32 %v189, 7
  %v191 = vsub.s32 0, %v190
  %v192 = vrot.slane %v182, %v191
  %v193 = vlaneseq
  %v194 = vshrl.u32 %v193, 7
  %v195 = vsub.s32 0, %v194
  %v196 = vrot.slane %v186, %v195
  %v197 = vsel %vm177, %v192, %v175
  %v198 = vsel %vm177, %v196, %v176
  %vm199 = vcmp.eq.s32.totalorder %v88, 5
  %v201 = vlaneseq
  %v202 = vshrl.u32 %v201, 7
  %v203 = vsub.s32 0, %v202
  %v204 = vrot.slane %v84, %v203
  %v205 = vlaneseq
  %v206 = vshrl.u32 %v205, 7
  %v207 = vsub.s32 2, %v206
  %v208 = vrot.slane %v84, %v207
  %v211 = vlaneseq
  %v212 = vshrl.u32 %v211, 7
  %v213 = vsub.s32 0, %v212
  %v214 = vrot.slane %v204, %v213
  %v215 = vlaneseq
  %v216 = vshrl.u32 %v215, 7
  %v217 = vsub.s32 0, %v216
  %v218 = vrot.slane %v208, %v217
  %v219 = vsel %vm199, %v214, %v197
  %v220 = vsel %vm199, %v218, %v198
  %vm221 = vcmp.eq.s32.totalorder %v88, 6
  %v223 = vlaneseq
  %v224 = vshrl.u32 %v223, 7
  %v225 = vsub.s32 0, %v224
  %v226 = vrot.slane %v85, %v225
  %v227 = vlaneseq
  %v228 = vshrl.u32 %v227, 7
  %v229 = vsub.s32 2, %v228
  %v230 = vrot.slane %v85, %v229
  %v233 = vlaneseq
  %v234 = vshrl.u32 %v233, 7
  %v235 = vsub.s32 0, %v234
  %v236 = vrot.slane %v226, %v235
  %v237 = vlaneseq
  %v238 = vshrl.u32 %v237, 7
  %v239 = vsub.s32 0, %v238
  %v240 = vrot.slane %v230, %v239
  %v241 = vsel %vm221, %v236, %v219
  %v242 = vsel %vm221, %v240, %v220
  %vm243 = vcmp.eq.s32.totalorder %v88, 7
  %v245 = vlaneseq
  %v246 = vshrl.u32 %v245, 7
  %v247 = vsub.s32 0, %v246
  %v248 = vrot.slane %v86, %v247
  %v249 = vlaneseq
  %v250 = vshrl.u32 %v249, 7
  %v251 = vsub.s32 2, %v250
  %v252 = vrot.slane %v86, %v251
  %v255 = vlaneseq
  %v256 = vshrl.u32 %v255, 7
  %v257 = vsub.s32 0, %v256
  %v258 = vrot.slane %v248, %v257
  %v259 = vlaneseq
  %v260 = vshrl.u32 %v259, 7
  %v261 = vsub.s32 0, %v260
  %v262 = vrot.slane %v252, %v261
  %v263 = vsel %vm243, %v258, %v241
  %v264 = vsel %vm243, %v262, %v242
  %v265 = vpack.c.bf16 %v263, %v263
  %v266 = vpack.c.bf16 %v264, %v264
  %v267 = vunpack.c.l.bf16 %v265
  %v268 = vunpack.c.l.bf16 %v266
  %v269 = vsub.f32 %v263, %v267
  %v270 = vsub.f32 %v264, %v268
  %v271 = vpack.c.bf16 %v269, %v269
  %v272 = vpack.c.bf16 %v270, %v270
  %v273 = vadd.s32 %v88, 8
  %v274 = vadd.s32 %v88, 16
  %v275 = vadd.s32 %v88, 24
  %v276 = vadd.s32 %v88, 32
  %v277 = vadd.s32 %v88, 40
  %v278 = vadd.s32 %v88, 48
  %v279 = vadd.s32 %v88, 56
  %v280 = vadd.s32 %v88, 64
  %v281 = vadd.s32 %v88, 72
  %v282 = vadd.s32 %v88, 80
  %v283 = vadd.s32 %v88, 88
  %v284 = vadd.s32 %v88, 96
  %v285 = vadd.s32 %v88, 104
  %v286 = vadd.s32 %v88, 112
  %v287 = vadd.s32 %v88, 120
  %v288 = vadd.s32 %v88, 128
  %v289 = vadd.s32 %v88, 136
  %v290 = vadd.s32 %v88, 144
  %v291 = vadd.s32 %v88, 152
  %v292 = vadd.s32 %v88, 160
  %v293 = vadd.s32 %v88, 168
  %v294 = vadd.s32 %v88, 176
  %v295 = vadd.s32 %v88, 184
  %v296 = vadd.s32 %v88, 192
  %v297 = vadd.s32 %v88, 200
  %v298 = vadd.s32 %v88, 208
  %v299 = vadd.s32 %v88, 216
  %v300 = vadd.s32 %v88, 224
  %v301 = vadd.s32 %v88, 232
  %v302 = vadd.s32 %v88, 240
  %v303 = vadd.s32 %v88, 248
  %v304 = vadd.s32 %v88, 256
  %v305 = vadd.s32 %v88, 264
  %v306 = vadd.s32 %v88, 272
  %v307 = vadd.s32 %v88, 280
  %v308 = vadd.s32 %v88, 288
  %v309 = vadd.s32 %v88, 296
  %v310 = vadd.s32 %v88, 304
  %v311 = vadd.s32 %v88, 312
  %v312 = vadd.s32 %v88, 320
  %v313 = vadd.s32 %v88, 328
  %v314 = vadd.s32 %v88, 336
  %v315 = vadd.s32 %v88, 344
  %v316 = vadd.s32 %v88, 352
  %v317 = vadd.s32 %v88, 360
  %v318 = vadd.s32 %v88, 368
  %v319 = vadd.s32 %v88, 376
  %v320 = vadd.s32 %v88, 384
  %v321 = vadd.s32 %v88, 392
  %v322 = vadd.s32 %v88, 400
  %v323 = vadd.s32 %v88, 408
  %v324 = vadd.s32 %v88, 416
  %v325 = vadd.s32 %v88, 424
  %v326 = vadd.s32 %v88, 432
  %v327 = vadd.s32 %v88, 440
  %v328 = vadd.s32 %v88, 448
  %v329 = vadd.s32 %v88, 456
  %v330 = vadd.s32 %v88, 464
  %v331 = vadd.s32 %v88, 472
  %v332 = vadd.s32 %v88, 480
  %v333 = vadd.s32 %v88, 488
  %v334 = vadd.s32 %v88, 496
  %v335 = vadd.s32 %v88, 504
  %v336 = vadd.s32 %v88, 512
  %v337 = vadd.s32 %v88, 520
  %v338 = vadd.s32 %v88, 528
  %v339 = vadd.s32 %v88, 536
  %v340 = vadd.s32 %v88, 544
  %v341 = vadd.s32 %v88, 552
  %v342 = vadd.s32 %v88, 560
  %v343 = vadd.s32 %v88, 568
  %v344 = vadd.s32 %v88, 576
  %v345 = vadd.s32 %v88, 584
  %v346 = vadd.s32 %v88, 592
  %v347 = vadd.s32 %v88, 600
  %v348 = vadd.s32 %v88, 608
  %v349 = vadd.s32 %v88, 616
  %v350 = vadd.s32 %v88, 624
  %v351 = vadd.s32 %v88, 632
  %v352 = vadd.s32 %v88, 640
  %v353 = vadd.s32 %v88, 648
  %v354 = vadd.s32 %v88, 656
  %v355 = vadd.s32 %v88, 664
  %v356 = vadd.s32 %v88, 672
  %v357 = vadd.s32 %v88, 680
  %v358 = vadd.s32 %v88, 688
  %v359 = vadd.s32 %v88, 696
  %v360 = vadd.s32 %v88, 704
  %v361 = vadd.s32 %v88, 712
  %v362 = vadd.s32 %v88, 720
  %v363 = vadd.s32 %v88, 728
  %v364 = vadd.s32 %v88, 736
  %v365 = vadd.s32 %v88, 744
  %v366 = vadd.s32 %v88, 752
  %v367 = vadd.s32 %v88, 760
  %v368 = vadd.s32 %v88, 768
  %v369 = vadd.s32 %v88, 776
  %v370 = vadd.s32 %v88, 784
  %v371 = vadd.s32 %v88, 792
  %v372 = vadd.s32 %v88, 800
  %v373 = vadd.s32 %v88, 808
  %v374 = vadd.s32 %v88, 816
  %v375 = vadd.s32 %v88, 824
  %v376 = vadd.s32 %v88, 832
  %v377 = vadd.s32 %v88, 840
  %v378 = vadd.s32 %v88, 848
  %v379 = vadd.s32 %v88, 856
  %v380 = vadd.s32 %v88, 864
  %v381 = vadd.s32 %v88, 872
  %v382 = vadd.s32 %v88, 880
  %v383 = vadd.s32 %v88, 888
  %v384 = vadd.s32 %v88, 896
  %v385 = vadd.s32 %v88, 904
  %v386 = vadd.s32 %v88, 912
  %v387 = vadd.s32 %v88, 920
  %v388 = vadd.s32 %v88, 928
  %v389 = vadd.s32 %v88, 936
  %v390 = vadd.s32 %v88, 944
  %v391 = vadd.s32 %v88, 952
  %v392 = vadd.s32 %v88, 960
  %v393 = vadd.s32 %v88, 968
  %v394 = vadd.s32 %v88, 976
  %v395 = vadd.s32 %v88, 984
  %v396 = vadd.s32 %v88, 992
  %v397 = vadd.s32 %v88, 1000
  %v398 = vadd.s32 %v88, 1008
  %v399 = vadd.s32 %v88, 1016
  %v400 = vlaneseq
  %v401 = vshrl.u32 %v400, 7
  %v402 = vsub.s32 0, %v401
  %v403 = vrot.slane %v64, %v402
  %v404 = vlaneseq
  %v405 = vshrl.u32 %v404, 7
  %v406 = vsub.s32 2, %v405
  %v407 = vrot.slane %v64, %v406
  %v408 = vlaneseq
  %v409 = vshrl.u32 %v408, 7
  %v410 = vsub.s32 0, %v409
  %v411 = vrot.slane %v403, %v410
  %v412 = vlaneseq
  %v413 = vshrl.u32 %v412, 7
  %v414 = vsub.s32 0, %v413
  %v415 = vrot.slane %v407, %v414
  %vm416 = vcmp.eq.s32.totalorder %v88, %v411
  %vm417 = vcmp.eq.s32.totalorder %v88, %v415
  %vm418 = vcmp.eq.s32.totalorder %v273, %v411
  %vm419 = vcmp.eq.s32.totalorder %v273, %v415
  %vm420 = vcmp.eq.s32.totalorder %v274, %v411
  %vm421 = vcmp.eq.s32.totalorder %v274, %v415
  %vm422 = vcmp.eq.s32.totalorder %v275, %v411
  %vm423 = vcmp.eq.s32.totalorder %v275, %v415
  %vm424 = vcmp.eq.s32.totalorder %v276, %v411
  %vm425 = vcmp.eq.s32.totalorder %v276, %v415
  %vm426 = vcmp.eq.s32.totalorder %v277, %v411
  %vm427 = vcmp.eq.s32.totalorder %v277, %v415
  %vm428 = vcmp.eq.s32.totalorder %v278, %v411
  %vm429 = vcmp.eq.s32.totalorder %v278, %v415
  %vm430 = vcmp.eq.s32.totalorder %v279, %v411
  %vm431 = vcmp.eq.s32.totalorder %v279, %v415
  %vm432 = vcmp.eq.s32.totalorder %v280, %v411
  %vm433 = vcmp.eq.s32.totalorder %v280, %v415
  %vm434 = vcmp.eq.s32.totalorder %v281, %v411
  %vm435 = vcmp.eq.s32.totalorder %v281, %v415
  %vm436 = vcmp.eq.s32.totalorder %v282, %v411
  %vm437 = vcmp.eq.s32.totalorder %v282, %v415
  %vm438 = vcmp.eq.s32.totalorder %v283, %v411
  %vm439 = vcmp.eq.s32.totalorder %v283, %v415
  %vm440 = vcmp.eq.s32.totalorder %v284, %v411
  %vm441 = vcmp.eq.s32.totalorder %v284, %v415
  %vm442 = vcmp.eq.s32.totalorder %v285, %v411
  %vm443 = vcmp.eq.s32.totalorder %v285, %v415
  %vm444 = vcmp.eq.s32.totalorder %v286, %v411
  %vm445 = vcmp.eq.s32.totalorder %v286, %v415
  %vm446 = vcmp.eq.s32.totalorder %v287, %v411
  %vm447 = vcmp.eq.s32.totalorder %v287, %v415
  %vm448 = vcmp.eq.s32.totalorder %v288, %v411
  %vm449 = vcmp.eq.s32.totalorder %v288, %v415
  %vm450 = vcmp.eq.s32.totalorder %v289, %v411
  %vm451 = vcmp.eq.s32.totalorder %v289, %v415
  %vm452 = vcmp.eq.s32.totalorder %v290, %v411
  %vm453 = vcmp.eq.s32.totalorder %v290, %v415
  %vm454 = vcmp.eq.s32.totalorder %v291, %v411
  %vm455 = vcmp.eq.s32.totalorder %v291, %v415
  %vm456 = vcmp.eq.s32.totalorder %v292, %v411
  %vm457 = vcmp.eq.s32.totalorder %v292, %v415
  %vm458 = vcmp.eq.s32.totalorder %v293, %v411
  %vm459 = vcmp.eq.s32.totalorder %v293, %v415
  %vm460 = vcmp.eq.s32.totalorder %v294, %v411
  %vm461 = vcmp.eq.s32.totalorder %v294, %v415
  %vm462 = vcmp.eq.s32.totalorder %v295, %v411
  %vm463 = vcmp.eq.s32.totalorder %v295, %v415
  %vm464 = vcmp.eq.s32.totalorder %v296, %v411
  %vm465 = vcmp.eq.s32.totalorder %v296, %v415
  %vm466 = vcmp.eq.s32.totalorder %v297, %v411
  %vm467 = vcmp.eq.s32.totalorder %v297, %v415
  %vm468 = vcmp.eq.s32.totalorder %v298, %v411
  %vm469 = vcmp.eq.s32.totalorder %v298, %v415
  %vm470 = vcmp.eq.s32.totalorder %v299, %v411
  %vm471 = vcmp.eq.s32.totalorder %v299, %v415
  %vm472 = vcmp.eq.s32.totalorder %v300, %v411
  %vm473 = vcmp.eq.s32.totalorder %v300, %v415
  %vm474 = vcmp.eq.s32.totalorder %v301, %v411
  %vm475 = vcmp.eq.s32.totalorder %v301, %v415
  %vm476 = vcmp.eq.s32.totalorder %v302, %v411
  %vm477 = vcmp.eq.s32.totalorder %v302, %v415
  %vm478 = vcmp.eq.s32.totalorder %v303, %v411
  %vm479 = vcmp.eq.s32.totalorder %v303, %v415
  %vm480 = vcmp.eq.s32.totalorder %v304, %v411
  %vm481 = vcmp.eq.s32.totalorder %v304, %v415
  %vm482 = vcmp.eq.s32.totalorder %v305, %v411
  %vm483 = vcmp.eq.s32.totalorder %v305, %v415
  %vm484 = vcmp.eq.s32.totalorder %v306, %v411
  %vm485 = vcmp.eq.s32.totalorder %v306, %v415
  %vm486 = vcmp.eq.s32.totalorder %v307, %v411
  %vm487 = vcmp.eq.s32.totalorder %v307, %v415
  %vm488 = vcmp.eq.s32.totalorder %v308, %v411
  %vm489 = vcmp.eq.s32.totalorder %v308, %v415
  %vm490 = vcmp.eq.s32.totalorder %v309, %v411
  %vm491 = vcmp.eq.s32.totalorder %v309, %v415
  %vm492 = vcmp.eq.s32.totalorder %v310, %v411
  %vm493 = vcmp.eq.s32.totalorder %v310, %v415
  %vm494 = vcmp.eq.s32.totalorder %v311, %v411
  %vm495 = vcmp.eq.s32.totalorder %v311, %v415
  %vm496 = vcmp.eq.s32.totalorder %v312, %v411
  %vm497 = vcmp.eq.s32.totalorder %v312, %v415
  %vm498 = vcmp.eq.s32.totalorder %v313, %v411
  %vm499 = vcmp.eq.s32.totalorder %v313, %v415
  %vm500 = vcmp.eq.s32.totalorder %v314, %v411
  %vm501 = vcmp.eq.s32.totalorder %v314, %v415
  %vm502 = vcmp.eq.s32.totalorder %v315, %v411
  %vm503 = vcmp.eq.s32.totalorder %v315, %v415
  %vm504 = vcmp.eq.s32.totalorder %v316, %v411
  %vm505 = vcmp.eq.s32.totalorder %v316, %v415
  %vm506 = vcmp.eq.s32.totalorder %v317, %v411
  %vm507 = vcmp.eq.s32.totalorder %v317, %v415
  %vm508 = vcmp.eq.s32.totalorder %v318, %v411
  %vm509 = vcmp.eq.s32.totalorder %v318, %v415
  %vm510 = vcmp.eq.s32.totalorder %v319, %v411
  %vm511 = vcmp.eq.s32.totalorder %v319, %v415
  %vm512 = vcmp.eq.s32.totalorder %v320, %v411
  %vm513 = vcmp.eq.s32.totalorder %v320, %v415
  %vm514 = vcmp.eq.s32.totalorder %v321, %v411
  %vm515 = vcmp.eq.s32.totalorder %v321, %v415
  %vm516 = vcmp.eq.s32.totalorder %v322, %v411
  %vm517 = vcmp.eq.s32.totalorder %v322, %v415
  %vm518 = vcmp.eq.s32.totalorder %v323, %v411
  %vm519 = vcmp.eq.s32.totalorder %v323, %v415
  %vm520 = vcmp.eq.s32.totalorder %v324, %v411
  %vm521 = vcmp.eq.s32.totalorder %v324, %v415
  %vm522 = vcmp.eq.s32.totalorder %v325, %v411
  %vm523 = vcmp.eq.s32.totalorder %v325, %v415
  %vm524 = vcmp.eq.s32.totalorder %v326, %v411
  %vm525 = vcmp.eq.s32.totalorder %v326, %v415
  %vm526 = vcmp.eq.s32.totalorder %v327, %v411
  %vm527 = vcmp.eq.s32.totalorder %v327, %v415
  %vm528 = vcmp.eq.s32.totalorder %v328, %v411
  %vm529 = vcmp.eq.s32.totalorder %v328, %v415
  %vm530 = vcmp.eq.s32.totalorder %v329, %v411
  %vm531 = vcmp.eq.s32.totalorder %v329, %v415
  %vm532 = vcmp.eq.s32.totalorder %v330, %v411
  %vm533 = vcmp.eq.s32.totalorder %v330, %v415
  %vm534 = vcmp.eq.s32.totalorder %v331, %v411
  %vm535 = vcmp.eq.s32.totalorder %v331, %v415
  %vm536 = vcmp.eq.s32.totalorder %v332, %v411
  %vm537 = vcmp.eq.s32.totalorder %v332, %v415
  %vm538 = vcmp.eq.s32.totalorder %v333, %v411
  %vm539 = vcmp.eq.s32.totalorder %v333, %v415
  %vm540 = vcmp.eq.s32.totalorder %v334, %v411
  %vm541 = vcmp.eq.s32.totalorder %v334, %v415
  %vm542 = vcmp.eq.s32.totalorder %v335, %v411
  %vm543 = vcmp.eq.s32.totalorder %v335, %v415
  %vm544 = vcmp.eq.s32.totalorder %v336, %v411
  %vm545 = vcmp.eq.s32.totalorder %v336, %v415
  %vm546 = vcmp.eq.s32.totalorder %v337, %v411
  %vm547 = vcmp.eq.s32.totalorder %v337, %v415
  %vm548 = vcmp.eq.s32.totalorder %v338, %v411
  %vm549 = vcmp.eq.s32.totalorder %v338, %v415
  %vm550 = vcmp.eq.s32.totalorder %v339, %v411
  %vm551 = vcmp.eq.s32.totalorder %v339, %v415
  %vm552 = vcmp.eq.s32.totalorder %v340, %v411
  %vm553 = vcmp.eq.s32.totalorder %v340, %v415
  %vm554 = vcmp.eq.s32.totalorder %v341, %v411
  %vm555 = vcmp.eq.s32.totalorder %v341, %v415
  %vm556 = vcmp.eq.s32.totalorder %v342, %v411
  %vm557 = vcmp.eq.s32.totalorder %v342, %v415
  %vm558 = vcmp.eq.s32.totalorder %v343, %v411
  %vm559 = vcmp.eq.s32.totalorder %v343, %v415
  %vm560 = vcmp.eq.s32.totalorder %v344, %v411
  %vm561 = vcmp.eq.s32.totalorder %v344, %v415
  %vm562 = vcmp.eq.s32.totalorder %v345, %v411
  %vm563 = vcmp.eq.s32.totalorder %v345, %v415
  %vm564 = vcmp.eq.s32.totalorder %v346, %v411
  %vm565 = vcmp.eq.s32.totalorder %v346, %v415
  %vm566 = vcmp.eq.s32.totalorder %v347, %v411
  %vm567 = vcmp.eq.s32.totalorder %v347, %v415
  %vm568 = vcmp.eq.s32.totalorder %v348, %v411
  %vm569 = vcmp.eq.s32.totalorder %v348, %v415
  %vm570 = vcmp.eq.s32.totalorder %v349, %v411
  %vm571 = vcmp.eq.s32.totalorder %v349, %v415
  %vm572 = vcmp.eq.s32.totalorder %v350, %v411
  %vm573 = vcmp.eq.s32.totalorder %v350, %v415
  %vm574 = vcmp.eq.s32.totalorder %v351, %v411
  %vm575 = vcmp.eq.s32.totalorder %v351, %v415
  %vm576 = vcmp.eq.s32.totalorder %v352, %v411
  %vm577 = vcmp.eq.s32.totalorder %v352, %v415
  %vm578 = vcmp.eq.s32.totalorder %v353, %v411
  %vm579 = vcmp.eq.s32.totalorder %v353, %v415
  %vm580 = vcmp.eq.s32.totalorder %v354, %v411
  %vm581 = vcmp.eq.s32.totalorder %v354, %v415
  %vm582 = vcmp.eq.s32.totalorder %v355, %v411
  %vm583 = vcmp.eq.s32.totalorder %v355, %v415
  %vm584 = vcmp.eq.s32.totalorder %v356, %v411
  %vm585 = vcmp.eq.s32.totalorder %v356, %v415
  %vm586 = vcmp.eq.s32.totalorder %v357, %v411
  %vm587 = vcmp.eq.s32.totalorder %v357, %v415
  %vm588 = vcmp.eq.s32.totalorder %v358, %v411
  %vm589 = vcmp.eq.s32.totalorder %v358, %v415
  %vm590 = vcmp.eq.s32.totalorder %v359, %v411
  %vm591 = vcmp.eq.s32.totalorder %v359, %v415
  %vm592 = vcmp.eq.s32.totalorder %v360, %v411
  %vm593 = vcmp.eq.s32.totalorder %v360, %v415
  %vm594 = vcmp.eq.s32.totalorder %v361, %v411
  %vm595 = vcmp.eq.s32.totalorder %v361, %v415
  %vm596 = vcmp.eq.s32.totalorder %v362, %v411
  %vm597 = vcmp.eq.s32.totalorder %v362, %v415
  %vm598 = vcmp.eq.s32.totalorder %v363, %v411
  %vm599 = vcmp.eq.s32.totalorder %v363, %v415
  %vm600 = vcmp.eq.s32.totalorder %v364, %v411
  %vm601 = vcmp.eq.s32.totalorder %v364, %v415
  %vm602 = vcmp.eq.s32.totalorder %v365, %v411
  %vm603 = vcmp.eq.s32.totalorder %v365, %v415
  %vm604 = vcmp.eq.s32.totalorder %v366, %v411
  %vm605 = vcmp.eq.s32.totalorder %v366, %v415
  %vm606 = vcmp.eq.s32.totalorder %v367, %v411
  %vm607 = vcmp.eq.s32.totalorder %v367, %v415
  %vm608 = vcmp.eq.s32.totalorder %v368, %v411
  %vm609 = vcmp.eq.s32.totalorder %v368, %v415
  %vm610 = vcmp.eq.s32.totalorder %v369, %v411
  %vm611 = vcmp.eq.s32.totalorder %v369, %v415
  %vm612 = vcmp.eq.s32.totalorder %v370, %v411
  %vm613 = vcmp.eq.s32.totalorder %v370, %v415
  %vm614 = vcmp.eq.s32.totalorder %v371, %v411
  %vm615 = vcmp.eq.s32.totalorder %v371, %v415
  %vm616 = vcmp.eq.s32.totalorder %v372, %v411
  %vm617 = vcmp.eq.s32.totalorder %v372, %v415
  %vm618 = vcmp.eq.s32.totalorder %v373, %v411
  %vm619 = vcmp.eq.s32.totalorder %v373, %v415
  %vm620 = vcmp.eq.s32.totalorder %v374, %v411
  %vm621 = vcmp.eq.s32.totalorder %v374, %v415
  %vm622 = vcmp.eq.s32.totalorder %v375, %v411
  %vm623 = vcmp.eq.s32.totalorder %v375, %v415
  %vm624 = vcmp.eq.s32.totalorder %v376, %v411
  %vm625 = vcmp.eq.s32.totalorder %v376, %v415
  %vm626 = vcmp.eq.s32.totalorder %v377, %v411
  %vm627 = vcmp.eq.s32.totalorder %v377, %v415
  %vm628 = vcmp.eq.s32.totalorder %v378, %v411
  %vm629 = vcmp.eq.s32.totalorder %v378, %v415
  %vm630 = vcmp.eq.s32.totalorder %v379, %v411
  %vm631 = vcmp.eq.s32.totalorder %v379, %v415
  %vm632 = vcmp.eq.s32.totalorder %v380, %v411
  %vm633 = vcmp.eq.s32.totalorder %v380, %v415
  %vm634 = vcmp.eq.s32.totalorder %v381, %v411
  %vm635 = vcmp.eq.s32.totalorder %v381, %v415
  %vm636 = vcmp.eq.s32.totalorder %v382, %v411
  %vm637 = vcmp.eq.s32.totalorder %v382, %v415
  %vm638 = vcmp.eq.s32.totalorder %v383, %v411
  %vm639 = vcmp.eq.s32.totalorder %v383, %v415
  %vm640 = vcmp.eq.s32.totalorder %v384, %v411
  %vm641 = vcmp.eq.s32.totalorder %v384, %v415
  %vm642 = vcmp.eq.s32.totalorder %v385, %v411
  %vm643 = vcmp.eq.s32.totalorder %v385, %v415
  %vm644 = vcmp.eq.s32.totalorder %v386, %v411
  %vm645 = vcmp.eq.s32.totalorder %v386, %v415
  %vm646 = vcmp.eq.s32.totalorder %v387, %v411
  %vm647 = vcmp.eq.s32.totalorder %v387, %v415
  %vm648 = vcmp.eq.s32.totalorder %v388, %v411
  %vm649 = vcmp.eq.s32.totalorder %v388, %v415
  %vm650 = vcmp.eq.s32.totalorder %v389, %v411
  %vm651 = vcmp.eq.s32.totalorder %v389, %v415
  %vm652 = vcmp.eq.s32.totalorder %v390, %v411
  %vm653 = vcmp.eq.s32.totalorder %v390, %v415
  %vm654 = vcmp.eq.s32.totalorder %v391, %v411
  %vm655 = vcmp.eq.s32.totalorder %v391, %v415
  %vm656 = vcmp.eq.s32.totalorder %v392, %v411
  %vm657 = vcmp.eq.s32.totalorder %v392, %v415
  %vm658 = vcmp.eq.s32.totalorder %v393, %v411
  %vm659 = vcmp.eq.s32.totalorder %v393, %v415
  %vm660 = vcmp.eq.s32.totalorder %v394, %v411
  %vm661 = vcmp.eq.s32.totalorder %v394, %v415
  %vm662 = vcmp.eq.s32.totalorder %v395, %v411
  %vm663 = vcmp.eq.s32.totalorder %v395, %v415
  %vm664 = vcmp.eq.s32.totalorder %v396, %v411
  %vm665 = vcmp.eq.s32.totalorder %v396, %v415
  %vm666 = vcmp.eq.s32.totalorder %v397, %v411
  %vm667 = vcmp.eq.s32.totalorder %v397, %v415
  %vm668 = vcmp.eq.s32.totalorder %v398, %v411
  %vm669 = vcmp.eq.s32.totalorder %v398, %v415
  %vm670 = vcmp.eq.s32.totalorder %v399, %v411
  %vm671 = vcmp.eq.s32.totalorder %v399, %v415
  %v672 = vsel %vm416, 1.0, 0.0
  %v673 = vsel %vm417, 1.0, 0.0
  %v674 = vsel %vm418, 1.0, 0.0
  %v675 = vsel %vm419, 1.0, 0.0
  %v676 = vsel %vm420, 1.0, 0.0
  %v677 = vsel %vm421, 1.0, 0.0
  %v678 = vsel %vm422, 1.0, 0.0
  %v679 = vsel %vm423, 1.0, 0.0
  %v680 = vsel %vm424, 1.0, 0.0
  %v681 = vsel %vm425, 1.0, 0.0
  %v682 = vsel %vm426, 1.0, 0.0
  %v683 = vsel %vm427, 1.0, 0.0
  %v684 = vsel %vm428, 1.0, 0.0
  %v685 = vsel %vm429, 1.0, 0.0
  %v686 = vsel %vm430, 1.0, 0.0
  %v687 = vsel %vm431, 1.0, 0.0
  %v688 = vsel %vm432, 1.0, 0.0
  %v689 = vsel %vm433, 1.0, 0.0
  %v690 = vsel %vm434, 1.0, 0.0
  %v691 = vsel %vm435, 1.0, 0.0
  %v692 = vsel %vm436, 1.0, 0.0
  %v693 = vsel %vm437, 1.0, 0.0
  %v694 = vsel %vm438, 1.0, 0.0
  %v695 = vsel %vm439, 1.0, 0.0
  %v696 = vsel %vm440, 1.0, 0.0
  %v697 = vsel %vm441, 1.0, 0.0
  %v698 = vsel %vm442, 1.0, 0.0
  %v699 = vsel %vm443, 1.0, 0.0
  %v700 = vsel %vm444, 1.0, 0.0
  %v701 = vsel %vm445, 1.0, 0.0
  %v702 = vsel %vm446, 1.0, 0.0
  %v703 = vsel %vm447, 1.0, 0.0
  %v704 = vsel %vm448, 1.0, 0.0
  %v705 = vsel %vm449, 1.0, 0.0
  %v706 = vsel %vm450, 1.0, 0.0
  %v707 = vsel %vm451, 1.0, 0.0
  %v708 = vsel %vm452, 1.0, 0.0
  %v709 = vsel %vm453, 1.0, 0.0
  %v710 = vsel %vm454, 1.0, 0.0
  %v711 = vsel %vm455, 1.0, 0.0
  %v712 = vsel %vm456, 1.0, 0.0
  %v713 = vsel %vm457, 1.0, 0.0
  %v714 = vsel %vm458, 1.0, 0.0
  %v715 = vsel %vm459, 1.0, 0.0
  %v716 = vsel %vm460, 1.0, 0.0
  %v717 = vsel %vm461, 1.0, 0.0
  %v718 = vsel %vm462, 1.0, 0.0
  %v719 = vsel %vm463, 1.0, 0.0
  %v720 = vsel %vm464, 1.0, 0.0
  %v721 = vsel %vm465, 1.0, 0.0
  %v722 = vsel %vm466, 1.0, 0.0
  %v723 = vsel %vm467, 1.0, 0.0
  %v724 = vsel %vm468, 1.0, 0.0
  %v725 = vsel %vm469, 1.0, 0.0
  %v726 = vsel %vm470, 1.0, 0.0
  %v727 = vsel %vm471, 1.0, 0.0
  %v728 = vsel %vm472, 1.0, 0.0
  %v729 = vsel %vm473, 1.0, 0.0
  %v730 = vsel %vm474, 1.0, 0.0
  %v731 = vsel %vm475, 1.0, 0.0
  %v732 = vsel %vm476, 1.0, 0.0
  %v733 = vsel %vm477, 1.0, 0.0
  %v734 = vsel %vm478, 1.0, 0.0
  %v735 = vsel %vm479, 1.0, 0.0
  %v736 = vsel %vm480, 1.0, 0.0
  %v737 = vsel %vm481, 1.0, 0.0
  %v738 = vsel %vm482, 1.0, 0.0
  %v739 = vsel %vm483, 1.0, 0.0
  %v740 = vsel %vm484, 1.0, 0.0
  %v741 = vsel %vm485, 1.0, 0.0
  %v742 = vsel %vm486, 1.0, 0.0
  %v743 = vsel %vm487, 1.0, 0.0
  %v744 = vsel %vm488, 1.0, 0.0
  %v745 = vsel %vm489, 1.0, 0.0
  %v746 = vsel %vm490, 1.0, 0.0
  %v747 = vsel %vm491, 1.0, 0.0
  %v748 = vsel %vm492, 1.0, 0.0
  %v749 = vsel %vm493, 1.0, 0.0
  %v750 = vsel %vm494, 1.0, 0.0
  %v751 = vsel %vm495, 1.0, 0.0
  %v752 = vsel %vm496, 1.0, 0.0
  %v753 = vsel %vm497, 1.0, 0.0
  %v754 = vsel %vm498, 1.0, 0.0
  %v755 = vsel %vm499, 1.0, 0.0
  %v756 = vsel %vm500, 1.0, 0.0
  %v757 = vsel %vm501, 1.0, 0.0
  %v758 = vsel %vm502, 1.0, 0.0
  %v759 = vsel %vm503, 1.0, 0.0
  %v760 = vsel %vm504, 1.0, 0.0
  %v761 = vsel %vm505, 1.0, 0.0
  %v762 = vsel %vm506, 1.0, 0.0
  %v763 = vsel %vm507, 1.0, 0.0
  %v764 = vsel %vm508, 1.0, 0.0
  %v765 = vsel %vm509, 1.0, 0.0
  %v766 = vsel %vm510, 1.0, 0.0
  %v767 = vsel %vm511, 1.0, 0.0
  %v768 = vsel %vm512, 1.0, 0.0
  %v769 = vsel %vm513, 1.0, 0.0
  %v770 = vsel %vm514, 1.0, 0.0
  %v771 = vsel %vm515, 1.0, 0.0
  %v772 = vsel %vm516, 1.0, 0.0
  %v773 = vsel %vm517, 1.0, 0.0
  %v774 = vsel %vm518, 1.0, 0.0
  %v775 = vsel %vm519, 1.0, 0.0
  %v776 = vsel %vm520, 1.0, 0.0
  %v777 = vsel %vm521, 1.0, 0.0
  %v778 = vsel %vm522, 1.0, 0.0
  %v779 = vsel %vm523, 1.0, 0.0
  %v780 = vsel %vm524, 1.0, 0.0
  %v781 = vsel %vm525, 1.0, 0.0
  %v782 = vsel %vm526, 1.0, 0.0
  %v783 = vsel %vm527, 1.0, 0.0
  %v784 = vsel %vm528, 1.0, 0.0
  %v785 = vsel %vm529, 1.0, 0.0
  %v786 = vsel %vm530, 1.0, 0.0
  %v787 = vsel %vm531, 1.0, 0.0
  %v788 = vsel %vm532, 1.0, 0.0
  %v789 = vsel %vm533, 1.0, 0.0
  %v790 = vsel %vm534, 1.0, 0.0
  %v791 = vsel %vm535, 1.0, 0.0
  %v792 = vsel %vm536, 1.0, 0.0
  %v793 = vsel %vm537, 1.0, 0.0
  %v794 = vsel %vm538, 1.0, 0.0
  %v795 = vsel %vm539, 1.0, 0.0
  %v796 = vsel %vm540, 1.0, 0.0
  %v797 = vsel %vm541, 1.0, 0.0
  %v798 = vsel %vm542, 1.0, 0.0
  %v799 = vsel %vm543, 1.0, 0.0
  %v800 = vsel %vm544, 1.0, 0.0
  %v801 = vsel %vm545, 1.0, 0.0
  %v802 = vsel %vm546, 1.0, 0.0
  %v803 = vsel %vm547, 1.0, 0.0
  %v804 = vsel %vm548, 1.0, 0.0
  %v805 = vsel %vm549, 1.0, 0.0
  %v806 = vsel %vm550, 1.0, 0.0
  %v807 = vsel %vm551, 1.0, 0.0
  %v808 = vsel %vm552, 1.0, 0.0
  %v809 = vsel %vm553, 1.0, 0.0
  %v810 = vsel %vm554, 1.0, 0.0
  %v811 = vsel %vm555, 1.0, 0.0
  %v812 = vsel %vm556, 1.0, 0.0
  %v813 = vsel %vm557, 1.0, 0.0
  %v814 = vsel %vm558, 1.0, 0.0
  %v815 = vsel %vm559, 1.0, 0.0
  %v816 = vsel %vm560, 1.0, 0.0
  %v817 = vsel %vm561, 1.0, 0.0
  %v818 = vsel %vm562, 1.0, 0.0
  %v819 = vsel %vm563, 1.0, 0.0
  %v820 = vsel %vm564, 1.0, 0.0
  %v821 = vsel %vm565, 1.0, 0.0
  %v822 = vsel %vm566, 1.0, 0.0
  %v823 = vsel %vm567, 1.0, 0.0
  %v824 = vsel %vm568, 1.0, 0.0
  %v825 = vsel %vm569, 1.0, 0.0
  %v826 = vsel %vm570, 1.0, 0.0
  %v827 = vsel %vm571, 1.0, 0.0
  %v828 = vsel %vm572, 1.0, 0.0
  %v829 = vsel %vm573, 1.0, 0.0
  %v830 = vsel %vm574, 1.0, 0.0
  %v831 = vsel %vm575, 1.0, 0.0
  %v832 = vsel %vm576, 1.0, 0.0
  %v833 = vsel %vm577, 1.0, 0.0
  %v834 = vsel %vm578, 1.0, 0.0
  %v835 = vsel %vm579, 1.0, 0.0
  %v836 = vsel %vm580, 1.0, 0.0
  %v837 = vsel %vm581, 1.0, 0.0
  %v838 = vsel %vm582, 1.0, 0.0
  %v839 = vsel %vm583, 1.0, 0.0
  %v840 = vsel %vm584, 1.0, 0.0
  %v841 = vsel %vm585, 1.0, 0.0
  %v842 = vsel %vm586, 1.0, 0.0
  %v843 = vsel %vm587, 1.0, 0.0
  %v844 = vsel %vm588, 1.0, 0.0
  %v845 = vsel %vm589, 1.0, 0.0
  %v846 = vsel %vm590, 1.0, 0.0
  %v847 = vsel %vm591, 1.0, 0.0
  %v848 = vsel %vm592, 1.0, 0.0
  %v849 = vsel %vm593, 1.0, 0.0
  %v850 = vsel %vm594, 1.0, 0.0
  %v851 = vsel %vm595, 1.0, 0.0
  %v852 = vsel %vm596, 1.0, 0.0
  %v853 = vsel %vm597, 1.0, 0.0
  %v854 = vsel %vm598, 1.0, 0.0
  %v855 = vsel %vm599, 1.0, 0.0
  %v856 = vsel %vm600, 1.0, 0.0
  %v857 = vsel %vm601, 1.0, 0.0
  %v858 = vsel %vm602, 1.0, 0.0
  %v859 = vsel %vm603, 1.0, 0.0
  %v860 = vsel %vm604, 1.0, 0.0
  %v861 = vsel %vm605, 1.0, 0.0
  %v862 = vsel %vm606, 1.0, 0.0
  %v863 = vsel %vm607, 1.0, 0.0
  %v864 = vsel %vm608, 1.0, 0.0
  %v865 = vsel %vm609, 1.0, 0.0
  %v866 = vsel %vm610, 1.0, 0.0
  %v867 = vsel %vm611, 1.0, 0.0
  %v868 = vsel %vm612, 1.0, 0.0
  %v869 = vsel %vm613, 1.0, 0.0
  %v870 = vsel %vm614, 1.0, 0.0
  %v871 = vsel %vm615, 1.0, 0.0
  %v872 = vsel %vm616, 1.0, 0.0
  %v873 = vsel %vm617, 1.0, 0.0
  %v874 = vsel %vm618, 1.0, 0.0
  %v875 = vsel %vm619, 1.0, 0.0
  %v876 = vsel %vm620, 1.0, 0.0
  %v877 = vsel %vm621, 1.0, 0.0
  %v878 = vsel %vm622, 1.0, 0.0
  %v879 = vsel %vm623, 1.0, 0.0
  %v880 = vsel %vm624, 1.0, 0.0
  %v881 = vsel %vm625, 1.0, 0.0
  %v882 = vsel %vm626, 1.0, 0.0
  %v883 = vsel %vm627, 1.0, 0.0
  %v884 = vsel %vm628, 1.0, 0.0
  %v885 = vsel %vm629, 1.0, 0.0
  %v886 = vsel %vm630, 1.0, 0.0
  %v887 = vsel %vm631, 1.0, 0.0
  %v888 = vsel %vm632, 1.0, 0.0
  %v889 = vsel %vm633, 1.0, 0.0
  %v890 = vsel %vm634, 1.0, 0.0
  %v891 = vsel %vm635, 1.0, 0.0
  %v892 = vsel %vm636, 1.0, 0.0
  %v893 = vsel %vm637, 1.0, 0.0
  %v894 = vsel %vm638, 1.0, 0.0
  %v895 = vsel %vm639, 1.0, 0.0
  %v896 = vsel %vm640, 1.0, 0.0
  %v897 = vsel %vm641, 1.0, 0.0
  %v898 = vsel %vm642, 1.0, 0.0
  %v899 = vsel %vm643, 1.0, 0.0
  %v900 = vsel %vm644, 1.0, 0.0
  %v901 = vsel %vm645, 1.0, 0.0
  %v902 = vsel %vm646, 1.0, 0.0
  %v903 = vsel %vm647, 1.0, 0.0
  %v904 = vsel %vm648, 1.0, 0.0
  %v905 = vsel %vm649, 1.0, 0.0
  %v906 = vsel %vm650, 1.0, 0.0
  %v907 = vsel %vm651, 1.0, 0.0
  %v908 = vsel %vm652, 1.0, 0.0
  %v909 = vsel %vm653, 1.0, 0.0
  %v910 = vsel %vm654, 1.0, 0.0
  %v911 = vsel %vm655, 1.0, 0.0
  %v912 = vsel %vm656, 1.0, 0.0
  %v913 = vsel %vm657, 1.0, 0.0
  %v914 = vsel %vm658, 1.0, 0.0
  %v915 = vsel %vm659, 1.0, 0.0
  %v916 = vsel %vm660, 1.0, 0.0
  %v917 = vsel %vm661, 1.0, 0.0
  %v918 = vsel %vm662, 1.0, 0.0
  %v919 = vsel %vm663, 1.0, 0.0
  %v920 = vsel %vm664, 1.0, 0.0
  %v921 = vsel %vm665, 1.0, 0.0
  %v922 = vsel %vm666, 1.0, 0.0
  %v923 = vsel %vm667, 1.0, 0.0
  %v924 = vsel %vm668, 1.0, 0.0
  %v925 = vsel %vm669, 1.0, 0.0
  %v926 = vsel %vm670, 1.0, 0.0
  %v927 = vsel %vm671, 1.0, 0.0
  %v928 = vpack.c.bf16 %v674, %v672
  %v929 = vpack.c.bf16 %v675, %v673
  %v930 = vpack.c.bf16 %v678, %v676
  %v931 = vpack.c.bf16 %v679, %v677
  %v932 = vpack.c.bf16 %v682, %v680
  %v933 = vpack.c.bf16 %v683, %v681
  %v934 = vpack.c.bf16 %v686, %v684
  %v935 = vpack.c.bf16 %v687, %v685
  %v936 = vpack.c.bf16 %v690, %v688
  %v937 = vpack.c.bf16 %v691, %v689
  %v938 = vpack.c.bf16 %v694, %v692
  %v939 = vpack.c.bf16 %v695, %v693
  %v940 = vpack.c.bf16 %v698, %v696
  %v941 = vpack.c.bf16 %v699, %v697
  %v942 = vpack.c.bf16 %v702, %v700
  %v943 = vpack.c.bf16 %v703, %v701
  %v944 = vpack.c.bf16 %v706, %v704
  %v945 = vpack.c.bf16 %v707, %v705
  %v946 = vpack.c.bf16 %v710, %v708
  %v947 = vpack.c.bf16 %v711, %v709
  %v948 = vpack.c.bf16 %v714, %v712
  %v949 = vpack.c.bf16 %v715, %v713
  %v950 = vpack.c.bf16 %v718, %v716
  %v951 = vpack.c.bf16 %v719, %v717
  %v952 = vpack.c.bf16 %v722, %v720
  %v953 = vpack.c.bf16 %v723, %v721
  %v954 = vpack.c.bf16 %v726, %v724
  %v955 = vpack.c.bf16 %v727, %v725
  %v956 = vpack.c.bf16 %v730, %v728
  %v957 = vpack.c.bf16 %v731, %v729
  %v958 = vpack.c.bf16 %v734, %v732
  %v959 = vpack.c.bf16 %v735, %v733
  %v960 = vpack.c.bf16 %v738, %v736
  %v961 = vpack.c.bf16 %v739, %v737
  %v962 = vpack.c.bf16 %v742, %v740
  %v963 = vpack.c.bf16 %v743, %v741
  %v964 = vpack.c.bf16 %v746, %v744
  %v965 = vpack.c.bf16 %v747, %v745
  %v966 = vpack.c.bf16 %v750, %v748
  %v967 = vpack.c.bf16 %v751, %v749
  %v968 = vpack.c.bf16 %v754, %v752
  %v969 = vpack.c.bf16 %v755, %v753
  %v970 = vpack.c.bf16 %v758, %v756
  %v971 = vpack.c.bf16 %v759, %v757
  %v972 = vpack.c.bf16 %v762, %v760
  %v973 = vpack.c.bf16 %v763, %v761
  %v974 = vpack.c.bf16 %v766, %v764
  %v975 = vpack.c.bf16 %v767, %v765
  %v976 = vpack.c.bf16 %v770, %v768
  %v977 = vpack.c.bf16 %v771, %v769
  %v978 = vpack.c.bf16 %v774, %v772
  %v979 = vpack.c.bf16 %v775, %v773
  %v980 = vpack.c.bf16 %v778, %v776
  %v981 = vpack.c.bf16 %v779, %v777
  %v982 = vpack.c.bf16 %v782, %v780
  %v983 = vpack.c.bf16 %v783, %v781
  %v984 = vpack.c.bf16 %v786, %v784
  %v985 = vpack.c.bf16 %v787, %v785
  %v986 = vpack.c.bf16 %v790, %v788
  %v987 = vpack.c.bf16 %v791, %v789
  %v988 = vpack.c.bf16 %v794, %v792
  %v989 = vpack.c.bf16 %v795, %v793
  %v990 = vpack.c.bf16 %v798, %v796
  %v991 = vpack.c.bf16 %v799, %v797
  %v992 = vpack.c.bf16 %v802, %v800
  %v993 = vpack.c.bf16 %v803, %v801
  %v994 = vpack.c.bf16 %v806, %v804
  %v995 = vpack.c.bf16 %v807, %v805
  %v996 = vpack.c.bf16 %v810, %v808
  %v997 = vpack.c.bf16 %v811, %v809
  %v998 = vpack.c.bf16 %v814, %v812
  %v999 = vpack.c.bf16 %v815, %v813
  %v1000 = vpack.c.bf16 %v818, %v816
  %v1001 = vpack.c.bf16 %v819, %v817
  %v1002 = vpack.c.bf16 %v822, %v820
  %v1003 = vpack.c.bf16 %v823, %v821
  %v1004 = vpack.c.bf16 %v826, %v824
  %v1005 = vpack.c.bf16 %v827, %v825
  %v1006 = vpack.c.bf16 %v830, %v828
  %v1007 = vpack.c.bf16 %v831, %v829
  %v1008 = vpack.c.bf16 %v834, %v832
  %v1009 = vpack.c.bf16 %v835, %v833
  %v1010 = vpack.c.bf16 %v838, %v836
  %v1011 = vpack.c.bf16 %v839, %v837
  %v1012 = vpack.c.bf16 %v842, %v840
  %v1013 = vpack.c.bf16 %v843, %v841
  %v1014 = vpack.c.bf16 %v846, %v844
  %v1015 = vpack.c.bf16 %v847, %v845
  %v1016 = vpack.c.bf16 %v850, %v848
  %v1017 = vpack.c.bf16 %v851, %v849
  %v1018 = vpack.c.bf16 %v854, %v852
  %v1019 = vpack.c.bf16 %v855, %v853
  %v1020 = vpack.c.bf16 %v858, %v856
  %v1021 = vpack.c.bf16 %v859, %v857
  %v1022 = vpack.c.bf16 %v862, %v860
  %v1023 = vpack.c.bf16 %v863, %v861
  %v1024 = vpack.c.bf16 %v866, %v864
  %v1025 = vpack.c.bf16 %v867, %v865
  %v1026 = vpack.c.bf16 %v870, %v868
  %v1027 = vpack.c.bf16 %v871, %v869
  %v1028 = vpack.c.bf16 %v874, %v872
  %v1029 = vpack.c.bf16 %v875, %v873
  %v1030 = vpack.c.bf16 %v878, %v876
  %v1031 = vpack.c.bf16 %v879, %v877
  %v1032 = vpack.c.bf16 %v882, %v880
  %v1033 = vpack.c.bf16 %v883, %v881
  %v1034 = vpack.c.bf16 %v886, %v884
  %v1035 = vpack.c.bf16 %v887, %v885
  %v1036 = vpack.c.bf16 %v890, %v888
  %v1037 = vpack.c.bf16 %v891, %v889
  %v1038 = vpack.c.bf16 %v894, %v892
  %v1039 = vpack.c.bf16 %v895, %v893
  %v1040 = vpack.c.bf16 %v898, %v896
  %v1041 = vpack.c.bf16 %v899, %v897
  %v1042 = vpack.c.bf16 %v902, %v900
  %v1043 = vpack.c.bf16 %v903, %v901
  %v1044 = vpack.c.bf16 %v906, %v904
  %v1045 = vpack.c.bf16 %v907, %v905
  %v1046 = vpack.c.bf16 %v910, %v908
  %v1047 = vpack.c.bf16 %v911, %v909
  %v1048 = vpack.c.bf16 %v914, %v912
  %v1049 = vpack.c.bf16 %v915, %v913
  %v1050 = vpack.c.bf16 %v918, %v916
  %v1051 = vpack.c.bf16 %v919, %v917
  %v1052 = vpack.c.bf16 %v922, %v920
  %v1053 = vpack.c.bf16 %v923, %v921
  %v1054 = vpack.c.bf16 %v926, %v924
  %v1055 = vpack.c.bf16 %v927, %v925
  %v1056 = vld [vmem:[%s1] sm:$0xff]
  %v1057 = vld [vmem:[%s1 + $0x8] sm:$0xff]
  %v1058 = vld [vmem:[%s1 + $0x10] sm:$0xff]
  %v1059 = vld [vmem:[%s1 + $0x18] sm:$0xff]
  %v1060 = vld [vmem:[%s1 + $0x20] sm:$0xff]
  %v1061 = vld [vmem:[%s1 + $0x28] sm:$0xff]
  %v1062 = vld [vmem:[%s1 + $0x30] sm:$0xff]
  %v1063 = vld [vmem:[%s1 + $0x38] sm:$0xff]
  %1064 = vmatprep.subr.bf16.mxu0 %v943
  %1065 = vmatpush1.bf16.xpose.msra.mxu0 %v942
  %1066 = vmatprep.subr.bf16.mxu0 %v941
  %1067 = vmatpush1.bf16.xpose.msra.mxu0 %v940
  %1068 = vmatprep.subr.bf16.mxu0 %v939
  %1069 = vmatpush1.bf16.xpose.msra.mxu0 %v938
  %1070 = vmatprep.subr.bf16.mxu0 %v937
  %1071 = vmatpush1.bf16.xpose.msra.mxu0 %v936
  %1072 = vmatprep.subr.bf16.mxu0 %v935
  %1073 = vmatpush1.bf16.xpose.msra.mxu0 %v934
  %1074 = vmatprep.subr.bf16.mxu0 %v933
  %1075 = vmatpush1.bf16.xpose.msra.mxu0 %v932
  %1076 = vmatprep.subr.bf16.mxu0 %v931
  %1077 = vmatpush1.bf16.xpose.msra.mxu0 %v930
  %1078 = vmatprep.subr.bf16.mxu0 %v929
  %1079 = vmatpush1.bf16.xpose.msra.mxu0 %v928
  %1080 = vmatprep.subr.bf16.mxu0 %v959
  %1081 = vmatpush2.bf16.xpose.msra.mxu0 %v958
  %1082 = vmatprep.subr.bf16.mxu0 %v957
  %1083 = vmatpush2.bf16.xpose.msra.mxu0 %v956
  %1084 = vmatprep.subr.bf16.mxu0 %v955
  %1085 = vmatpush2.bf16.xpose.msra.mxu0 %v954
  %1086 = vmatprep.subr.bf16.mxu0 %v953
  %1087 = vmatpush2.bf16.xpose.msra.mxu0 %v952
  %1088 = vmatprep.subr.bf16.mxu0 %v951
  %1089 = vmatpush2.bf16.xpose.msra.mxu0 %v950
  %1090 = vmatprep.subr.bf16.mxu0 %v949
  %1091 = vmatpush2.bf16.xpose.msra.mxu0 %v948
  %1092 = vmatprep.subr.bf16.mxu0 %v947
  %1093 = vmatpush2.bf16.xpose.msra.mxu0 %v946
  %1094 = vmatprep.subr.bf16.mxu0 %v945
  %1095 = vmatpush2.bf16.xpose.msra.mxu0 %v944
  %1096 = vmatprep.mubr.bf16.mxu0 %v266
  %1097 = vmatmul.mubr.bf16.gmra.mxu0 %v265
  %v1098 = vpop.f32.mrf.mxu0
  %v1099 = vadd.f32 0.0, %v1098
  %v1100 = vpop.f32.mrf.mxu0
  %v1101 = vadd.f32 0.0, %v1100
  %v1102 = vpop.f32.mrf.mxu0
  %v1103 = vpop.f32.mrf.mxu0
  %1104 = vdwg.mxu0
  %1105 = vmatprep.subr.bf16.mxu0 %v975
  %1106 = vmatpush1.bf16.xpose.msra.mxu0 %v974
  %1107 = vmatprep.subr.bf16.mxu0 %v973
  %1108 = vmatpush1.bf16.xpose.msra.mxu0 %v972
  %1109 = vmatprep.subr.bf16.mxu0 %v971
  %1110 = vmatpush1.bf16.xpose.msra.mxu0 %v970
  %1111 = vmatprep.subr.bf16.mxu0 %v969
  %1112 = vmatpush1.bf16.xpose.msra.mxu0 %v968
  %1113 = vmatprep.subr.bf16.mxu0 %v967
  %1114 = vmatpush1.bf16.xpose.msra.mxu0 %v966
  %1115 = vmatprep.subr.bf16.mxu0 %v965
  %1116 = vmatpush1.bf16.xpose.msra.mxu0 %v964
  %1117 = vmatprep.subr.bf16.mxu0 %v963
  %1118 = vmatpush1.bf16.xpose.msra.mxu0 %v962
  %1119 = vmatprep.subr.bf16.mxu0 %v961
  %1120 = vmatpush1.bf16.xpose.msra.mxu0 %v960
  %1121 = vmatprep.subr.bf16.mxu0 %v991
  %1122 = vmatpush2.bf16.xpose.msra.mxu0 %v990
  %1123 = vmatprep.subr.bf16.mxu0 %v989
  %1124 = vmatpush2.bf16.xpose.msra.mxu0 %v988
  %1125 = vmatprep.subr.bf16.mxu0 %v987
  %1126 = vmatpush2.bf16.xpose.msra.mxu0 %v986
  %1127 = vmatprep.subr.bf16.mxu0 %v985
  %1128 = vmatpush2.bf16.xpose.msra.mxu0 %v984
  %1129 = vmatprep.subr.bf16.mxu0 %v983
  %1130 = vmatpush2.bf16.xpose.msra.mxu0 %v982
  %1131 = vmatprep.subr.bf16.mxu0 %v981
  %1132 = vmatpush2.bf16.xpose.msra.mxu0 %v980
  %1133 = vmatprep.subr.bf16.mxu0 %v979
  %1134 = vmatpush2.bf16.xpose.msra.mxu0 %v978
  %1135 = vmatprep.subr.bf16.mxu0 %v977
  %1136 = vmatpush2.bf16.xpose.msra.mxu0 %v976
  %1137 = vmatprep.mubr.bf16.mxu0 %v266
  %1138 = vmatmul.mubr.bf16.gmra.mxu0 %v265
  %v1139 = vpop.f32.mrf.mxu0
  %v1140 = vadd.f32 0.0, %v1139
  %v1141 = vpop.f32.mrf.mxu0
  %v1142 = vadd.f32 0.0, %v1141
  %v1143 = vpop.f32.mrf.mxu0
  %v1144 = vpop.f32.mrf.mxu0
  %1145 = vdwg.mxu0
  %1146 = vmatprep.subr.bf16.mxu0 %v1007
  %1147 = vmatpush1.bf16.xpose.msra.mxu0 %v1006
  %1148 = vmatprep.subr.bf16.mxu0 %v1005
  %1149 = vmatpush1.bf16.xpose.msra.mxu0 %v1004
  %1150 = vmatprep.subr.bf16.mxu0 %v1003
  %1151 = vmatpush1.bf16.xpose.msra.mxu0 %v1002
  %1152 = vmatprep.subr.bf16.mxu0 %v1001
  %1153 = vmatpush1.bf16.xpose.msra.mxu0 %v1000
  %1154 = vmatprep.subr.bf16.mxu0 %v999
  %1155 = vmatpush1.bf16.xpose.msra.mxu0 %v998
  %1156 = vmatprep.subr.bf16.mxu0 %v997
  %1157 = vmatpush1.bf16.xpose.msra.mxu0 %v996
  %1158 = vmatprep.subr.bf16.mxu0 %v995
  %1159 = vmatpush1.bf16.xpose.msra.mxu0 %v994
  %1160 = vmatprep.subr.bf16.mxu0 %v993
  %1161 = vmatpush1.bf16.xpose.msra.mxu0 %v992
  %1162 = vmatprep.subr.bf16.mxu0 %v1023
  %1163 = vmatpush2.bf16.xpose.msra.mxu0 %v1022
  %1164 = vmatprep.subr.bf16.mxu0 %v1021
  %1165 = vmatpush2.bf16.xpose.msra.mxu0 %v1020
  %1166 = vmatprep.subr.bf16.mxu0 %v1019
  %1167 = vmatpush2.bf16.xpose.msra.mxu0 %v1018
  %1168 = vmatprep.subr.bf16.mxu0 %v1017
  %1169 = vmatpush2.bf16.xpose.msra.mxu0 %v1016
  %1170 = vmatprep.subr.bf16.mxu0 %v1015
  %1171 = vmatpush2.bf16.xpose.msra.mxu0 %v1014
  %1172 = vmatprep.subr.bf16.mxu0 %v1013
  %1173 = vmatpush2.bf16.xpose.msra.mxu0 %v1012
  %1174 = vmatprep.subr.bf16.mxu0 %v1011
  %1175 = vmatpush2.bf16.xpose.msra.mxu0 %v1010
  %1176 = vmatprep.subr.bf16.mxu0 %v1009
  %1177 = vmatpush2.bf16.xpose.msra.mxu0 %v1008
  %1178 = vmatprep.mubr.bf16.mxu0 %v266
  %1179 = vmatmul.mubr.bf16.gmra.mxu0 %v265
  %v1180 = vpop.f32.mrf.mxu0
  %v1181 = vadd.f32 0.0, %v1180
  %v1182 = vpop.f32.mrf.mxu0
  %v1183 = vadd.f32 0.0, %v1182
  %v1184 = vpop.f32.mrf.mxu0
  %v1185 = vpop.f32.mrf.mxu0
  %1186 = vdwg.mxu0
  %1187 = vmatprep.subr.bf16.mxu0 %v1039
  %1188 = vmatpush1.bf16.xpose.msra.mxu0 %v1038
  %1189 = vmatprep.subr.bf16.mxu0 %v1037
  %1190 = vmatpush1.bf16.xpose.msra.mxu0 %v1036
  %1191 = vmatprep.subr.bf16.mxu0 %v1035
  %1192 = vmatpush1.bf16.xpose.msra.mxu0 %v1034
  %1193 = vmatprep.subr.bf16.mxu0 %v1033
  %1194 = vmatpush1.bf16.xpose.msra.mxu0 %v1032
  %1195 = vmatprep.subr.bf16.mxu0 %v1031
  %1196 = vmatpush1.bf16.xpose.msra.mxu0 %v1030
  %1197 = vmatprep.subr.bf16.mxu0 %v1029
  %1198 = vmatpush1.bf16.xpose.msra.mxu0 %v1028
  %1199 = vmatprep.subr.bf16.mxu0 %v1027
  %1200 = vmatpush1.bf16.xpose.msra.mxu0 %v1026
  %1201 = vmatprep.subr.bf16.mxu0 %v1025
  %1202 = vmatpush1.bf16.xpose.msra.mxu0 %v1024
  %1203 = vmatprep.subr.bf16.mxu0 %v1055
  %1204 = vmatpush2.bf16.xpose.msra.mxu0 %v1054
  %1205 = vmatprep.subr.bf16.mxu0 %v1053
  %1206 = vmatpush2.bf16.xpose.msra.mxu0 %v1052
  %1207 = vmatprep.subr.bf16.mxu0 %v1051
  %1208 = vmatpush2.bf16.xpose.msra.mxu0 %v1050
  %1209 = vmatprep.subr.bf16.mxu0 %v1049
  %1210 = vmatpush2.bf16.xpose.msra.mxu0 %v1048
  %1211 = vmatprep.subr.bf16.mxu0 %v1047
  %1212 = vmatpush2.bf16.xpose.msra.mxu0 %v1046
  %1213 = vmatprep.subr.bf16.mxu0 %v1045
  %1214 = vmatpush2.bf16.xpose.msra.mxu0 %v1044
  %1215 = vmatprep.subr.bf16.mxu0 %v1043
  %1216 = vmatpush2.bf16.xpose.msra.mxu0 %v1042
  %1217 = vmatprep.subr.bf16.mxu0 %v1041
  %1218 = vmatpush2.bf16.xpose.msra.mxu0 %v1040
  %1219 = vmatprep.mubr.bf16.mxu0 %v266
  %1220 = vmatmul.mubr.bf16.gmra.mxu0 %v265
  %v1221 = vpop.f32.mrf.mxu0
  %v1222 = vadd.f32 0.0, %v1221
  %v1223 = vpop.f32.mrf.mxu0
  %v1224 = vadd.f32 0.0, %v1223
  %v1225 = vpop.f32.mrf.mxu0
  %v1226 = vpop.f32.mrf.mxu0
  %1227 = vdwg.mxu0
  %v1228 = vadd.f32 %v1056, %v1099
  %v1229 = vadd.f32 %v1057, %v1101
  %v1230 = vadd.f32 %v1058, %v1140
  %v1231 = vadd.f32 %v1059, %v1142
  %v1232 = vadd.f32 %v1060, %v1181
  %v1233 = vadd.f32 %v1061, %v1183
  %v1234 = vadd.f32 %v1062, %v1222
  %v1235 = vadd.f32 %v1063, %v1224
  %1236 = vst [vmem:[%s1] sm:$0xff] %v1228
  %1237 = vst [vmem:[%s1 + $0x8] sm:$0xff] %v1229
  %1238 = vst [vmem:[%s1 + $0x10] sm:$0xff] %v1230
  %1239 = vst [vmem:[%s1 + $0x18] sm:$0xff] %v1231
  %1240 = vst [vmem:[%s1 + $0x20] sm:$0xff] %v1232
  %1241 = vst [vmem:[%s1 + $0x28] sm:$0xff] %v1233
  %1242 = vst [vmem:[%s1 + $0x30] sm:$0xff] %v1234
  %1243 = vst [vmem:[%s1 + $0x38] sm:$0xff] %v1235
  %v1244 = vld [vmem:[%s1] sm:$0xff]
  %v1245 = vld [vmem:[%s1 + $0x8] sm:$0xff]
  %v1246 = vld [vmem:[%s1 + $0x10] sm:$0xff]
  %v1247 = vld [vmem:[%s1 + $0x18] sm:$0xff]
  %v1248 = vld [vmem:[%s1 + $0x20] sm:$0xff]
  %v1249 = vld [vmem:[%s1 + $0x28] sm:$0xff]
  %v1250 = vld [vmem:[%s1 + $0x30] sm:$0xff]
  %v1251 = vld [vmem:[%s1 + $0x38] sm:$0xff]
  %1252 = vmatprep.subr.bf16.mxu0 %v943
  %1253 = vmatpush1.bf16.xpose.msra.mxu0 %v942
  %1254 = vmatprep.subr.bf16.mxu0 %v941
  %1255 = vmatpush1.bf16.xpose.msra.mxu0 %v940
  %1256 = vmatprep.subr.bf16.mxu0 %v939
  %1257 = vmatpush1.bf16.xpose.msra.mxu0 %v938
  %1258 = vmatprep.subr.bf16.mxu0 %v937
  %1259 = vmatpush1.bf16.xpose.msra.mxu0 %v936
  %1260 = vmatprep.subr.bf16.mxu0 %v935
  %1261 = vmatpush1.bf16.xpose.msra.mxu0 %v934
  %1262 = vmatprep.subr.bf16.mxu0 %v933
  %1263 = vmatpush1.bf16.xpose.msra.mxu0 %v932
  %1264 = vmatprep.subr.bf16.mxu0 %v931
  %1265 = vmatpush1.bf16.xpose.msra.mxu0 %v930
  %1266 = vmatprep.subr.bf16.mxu0 %v929
  %1267 = vmatpush1.bf16.xpose.msra.mxu0 %v928
  %1268 = vmatprep.subr.bf16.mxu0 %v959
  %1269 = vmatpush2.bf16.xpose.msra.mxu0 %v958
  %1270 = vmatprep.subr.bf16.mxu0 %v957
  %1271 = vmatpush2.bf16.xpose.msra.mxu0 %v956
  %1272 = vmatprep.subr.bf16.mxu0 %v955
  %1273 = vmatpush2.bf16.xpose.msra.mxu0 %v954
  %1274 = vmatprep.subr.bf16.mxu0 %v953
  %1275 = vmatpush2.bf16.xpose.msra.mxu0 %v952
  %1276 = vmatprep.subr.bf16.mxu0 %v951
  %1277 = vmatpush2.bf16.xpose.msra.mxu0 %v950
  %1278 = vmatprep.subr.bf16.mxu0 %v949
  %1279 = vmatpush2.bf16.xpose.msra.mxu0 %v948
  %1280 = vmatprep.subr.bf16.mxu0 %v947
  %1281 = vmatpush2.bf16.xpose.msra.mxu0 %v946
  %1282 = vmatprep.subr.bf16.mxu0 %v945
  %1283 = vmatpush2.bf16.xpose.msra.mxu0 %v944
  %1284 = vmatprep.mubr.bf16.mxu0 %v272
  %1285 = vmatmul.mubr.bf16.gmra.mxu0 %v271
  %v1286 = vpop.f32.mrf.mxu0
  %v1287 = vadd.f32 0.0, %v1286
  %v1288 = vpop.f32.mrf.mxu0
  %v1289 = vadd.f32 0.0, %v1288
  %v1290 = vpop.f32.mrf.mxu0
  %v1291 = vpop.f32.mrf.mxu0
  %1292 = vdwg.mxu0
  %1293 = vmatprep.subr.bf16.mxu0 %v975
  %1294 = vmatpush1.bf16.xpose.msra.mxu0 %v974
  %1295 = vmatprep.subr.bf16.mxu0 %v973
  %1296 = vmatpush1.bf16.xpose.msra.mxu0 %v972
  %1297 = vmatprep.subr.bf16.mxu0 %v971
  %1298 = vmatpush1.bf16.xpose.msra.mxu0 %v970
  %1299 = vmatprep.subr.bf16.mxu0 %v969
  %1300 = vmatpush1.bf16.xpose.msra.mxu0 %v968
  %1301 = vmatprep.subr.bf16.mxu0 %v967
  %1302 = vmatpush1.bf16.xpose.msra.mxu0 %v966
  %1303 = vmatprep.subr.bf16.mxu0 %v965
  %1304 = vmatpush1.bf16.xpose.msra.mxu0 %v964
  %1305 = vmatprep.subr.bf16.mxu0 %v963
  %1306 = vmatpush1.bf16.xpose.msra.mxu0 %v962
  %1307 = vmatprep.subr.bf16.mxu0 %v961
  %1308 = vmatpush1.bf16.xpose.msra.mxu0 %v960
  %1309 = vmatprep.subr.bf16.mxu0 %v991
  %1310 = vmatpush2.bf16.xpose.msra.mxu0 %v990
  %1311 = vmatprep.subr.bf16.mxu0 %v989
  %1312 = vmatpush2.bf16.xpose.msra.mxu0 %v988
  %1313 = vmatprep.subr.bf16.mxu0 %v987
  %1314 = vmatpush2.bf16.xpose.msra.mxu0 %v986
  %1315 = vmatprep.subr.bf16.mxu0 %v985
  %1316 = vmatpush2.bf16.xpose.msra.mxu0 %v984
  %1317 = vmatprep.subr.bf16.mxu0 %v983
  %1318 = vmatpush2.bf16.xpose.msra.mxu0 %v982
  %1319 = vmatprep.subr.bf16.mxu0 %v981
  %1320 = vmatpush2.bf16.xpose.msra.mxu0 %v980
  %1321 = vmatprep.subr.bf16.mxu0 %v979
  %1322 = vmatpush2.bf16.xpose.msra.mxu0 %v978
  %1323 = vmatprep.subr.bf16.mxu0 %v977
  %1324 = vmatpush2.bf16.xpose.msra.mxu0 %v976
  %1325 = vmatprep.mubr.bf16.mxu0 %v272
  %1326 = vmatmul.mubr.bf16.gmra.mxu0 %v271
  %v1327 = vpop.f32.mrf.mxu0
  %v1328 = vadd.f32 0.0, %v1327
  %v1329 = vpop.f32.mrf.mxu0
  %v1330 = vadd.f32 0.0, %v1329
  %v1331 = vpop.f32.mrf.mxu0
  %v1332 = vpop.f32.mrf.mxu0
  %1333 = vdwg.mxu0
  %1334 = vmatprep.subr.bf16.mxu0 %v1007
  %1335 = vmatpush1.bf16.xpose.msra.mxu0 %v1006
  %1336 = vmatprep.subr.bf16.mxu0 %v1005
  %1337 = vmatpush1.bf16.xpose.msra.mxu0 %v1004
  %1338 = vmatprep.subr.bf16.mxu0 %v1003
  %1339 = vmatpush1.bf16.xpose.msra.mxu0 %v1002
  %1340 = vmatprep.subr.bf16.mxu0 %v1001
  %1341 = vmatpush1.bf16.xpose.msra.mxu0 %v1000
  %1342 = vmatprep.subr.bf16.mxu0 %v999
  %1343 = vmatpush1.bf16.xpose.msra.mxu0 %v998
  %1344 = vmatprep.subr.bf16.mxu0 %v997
  %1345 = vmatpush1.bf16.xpose.msra.mxu0 %v996
  %1346 = vmatprep.subr.bf16.mxu0 %v995
  %1347 = vmatpush1.bf16.xpose.msra.mxu0 %v994
  %1348 = vmatprep.subr.bf16.mxu0 %v993
  %1349 = vmatpush1.bf16.xpose.msra.mxu0 %v992
  %1350 = vmatprep.subr.bf16.mxu0 %v1023
  %1351 = vmatpush2.bf16.xpose.msra.mxu0 %v1022
  %1352 = vmatprep.subr.bf16.mxu0 %v1021
  %1353 = vmatpush2.bf16.xpose.msra.mxu0 %v1020
  %1354 = vmatprep.subr.bf16.mxu0 %v1019
  %1355 = vmatpush2.bf16.xpose.msra.mxu0 %v1018
  %1356 = vmatprep.subr.bf16.mxu0 %v1017
  %1357 = vmatpush2.bf16.xpose.msra.mxu0 %v1016
  %1358 = vmatprep.subr.bf16.mxu0 %v1015
  %1359 = vmatpush2.bf16.xpose.msra.mxu0 %v1014
  %1360 = vmatprep.subr.bf16.mxu0 %v1013
  %1361 = vmatpush2.bf16.xpose.msra.mxu0 %v1012
  %1362 = vmatprep.subr.bf16.mxu0 %v1011
  %1363 = vmatpush2.bf16.xpose.msra.mxu0 %v1010
  %1364 = vmatprep.subr.bf16.mxu0 %v1009
  %1365 = vmatpush2.bf16.xpose.msra.mxu0 %v1008
  %1366 = vmatprep.mubr.bf16.mxu0 %v272
  %1367 = vmatmul.mubr.bf16.gmra.mxu0 %v271
  %v1368 = vpop.f32.mrf.mxu0
  %v1369 = vadd.f32 0.0, %v1368
  %v1370 = vpop.f32.mrf.mxu0
  %v1371 = vadd.f32 0.0, %v1370
  %v1372 = vpop.f32.mrf.mxu0
  %v1373 = vpop.f32.mrf.mxu0
  %1374 = vdwg.mxu0
  %1375 = vmatprep.subr.bf16.mxu0 %v1039
  %1376 = vmatpush1.bf16.xpose.msra.mxu0 %v1038
  %1377 = vmatprep.subr.bf16.mxu0 %v1037
  %1378 = vmatpush1.bf16.xpose.msra.mxu0 %v1036
  %1379 = vmatprep.subr.bf16.mxu0 %v1035
  %1380 = vmatpush1.bf16.xpose.msra.mxu0 %v1034
  %1381 = vmatprep.subr.bf16.mxu0 %v1033
  %1382 = vmatpush1.bf16.xpose.msra.mxu0 %v1032
  %1383 = vmatprep.subr.bf16.mxu0 %v1031
  %1384 = vmatpush1.bf16.xpose.msra.mxu0 %v1030
  %1385 = vmatprep.subr.bf16.mxu0 %v1029
  %1386 = vmatpush1.bf16.xpose.msra.mxu0 %v1028
  %1387 = vmatprep.subr.bf16.mxu0 %v1027
  %1388 = vmatpush1.bf16.xpose.msra.mxu0 %v1026
  %1389 = vmatprep.subr.bf16.mxu0 %v1025
  %1390 = vmatpush1.bf16.xpose.msra.mxu0 %v1024
  %1391 = vmatprep.subr.bf16.mxu0 %v1055
  %1392 = vmatpush2.bf16.xpose.msra.mxu0 %v1054
  %1393 = vmatprep.subr.bf16.mxu0 %v1053
  %1394 = vmatpush2.bf16.xpose.msra.mxu0 %v1052
  %1395 = vmatprep.subr.bf16.mxu0 %v1051
  %1396 = vmatpush2.bf16.xpose.msra.mxu0 %v1050
  %1397 = vmatprep.subr.bf16.mxu0 %v1049
  %1398 = vmatpush2.bf16.xpose.msra.mxu0 %v1048
  %1399 = vmatprep.subr.bf16.mxu0 %v1047
  %1400 = vmatpush2.bf16.xpose.msra.mxu0 %v1046
  %1401 = vmatprep.subr.bf16.mxu0 %v1045
  %1402 = vmatpush2.bf16.xpose.msra.mxu0 %v1044
  %1403 = vmatprep.subr.bf16.mxu0 %v1043
  %1404 = vmatpush2.bf16.xpose.msra.mxu0 %v1042
  %1405 = vmatprep.subr.bf16.mxu0 %v1041
  %1406 = vmatpush2.bf16.xpose.msra.mxu0 %v1040
  %1407 = vmatprep.mubr.bf16.mxu0 %v272
  %1408 = vmatmul.mubr.bf16.gmra.mxu0 %v271
  %v1409 = vpop.f32.mrf.mxu0
  %v1410 = vadd.f32 0.0, %v1409
  %v1411 = vpop.f32.mrf.mxu0
  %v1412 = vadd.f32 0.0, %v1411
  %v1413 = vpop.f32.mrf.mxu0
  %v1414 = vpop.f32.mrf.mxu0
  %1415 = vdwg.mxu0
  %v1416 = vadd.f32 %v1244, %v1287
  %v1417 = vadd.f32 %v1245, %v1289
  %v1418 = vadd.f32 %v1246, %v1328
  %v1419 = vadd.f32 %v1247, %v1330
  %v1420 = vadd.f32 %v1248, %v1369
  %v1421 = vadd.f32 %v1249, %v1371
  %v1422 = vadd.f32 %v1250, %v1410
  %v1423 = vadd.f32 %v1251, %v1412
  %1424 = vst [vmem:[%s1] sm:$0xff] %v1416
  %1425 = vst [vmem:[%s1 + $0x8] sm:$0xff] %v1417
  %1426 = vst [vmem:[%s1 + $0x10] sm:$0xff] %v1418
  %1427 = vst [vmem:[%s1 + $0x18] sm:$0xff] %v1419
  %1428 = vst [vmem:[%s1 + $0x20] sm:$0xff] %v1420
  %1429 = vst [vmem:[%s1 + $0x28] sm:$0xff] %v1421
  %1430 = vst [vmem:[%s1 + $0x30] sm:$0xff] %v1422
  %1431 = vst [vmem:[%s1 + $0x38] sm:$0xff] %v1423
  // Predicated region
  $region10: #{fastbatch_interp_grad.1} parent=0 // pred_check
    _
  $region11: #{fastbatch_interp_grad.1} parent=0 // pred_check_branch
    %1433 = sbr.rel (0) target = $region13
  $region12: #{fastbatch_interp_grad.1} parent=0 // pred_region
    _
  $region13: #{fastbatch_interp_grad.1} parent=0 // pred_fallthru
    _
  // Predicated region
  $region14: #{fastbatch_interp_grad.1} parent=0 // pred_check
    _
  $region15: #{fastbatch_interp_grad.1} parent=0 // pred_check_branch
    %1435 = sbr.rel (0) target = $region17
  $region16: #{fastbatch_interp_grad.1} parent=0 // pred_region
    _
  $region17: #{fastbatch_interp_grad.1} parent=0 // pred_fallthru
    _

</llo_original>
